<compile_context>
chip_gen: v7x
topology: tpu7x:2x2x1
jax: 0.10.0
libtpu: 0.0.40
codegen_flags: <defaults>
</compile_context>

<pallas_src>
import jax
import jax.numpy as jnp
from jax import lax
from jax.experimental import pallas as pl
from jax.experimental.pallas import tpu as pltpu


_VMEM = pl.BlockSpec(memory_space=pltpu.MemorySpace.VMEM)


def _layernorm(x, g, b, eps=1e-5):
    mu = jnp.mean(x, axis=-1, keepdims=True)
    var = jnp.mean((x - mu) ** 2, axis=-1, keepdims=True)
    return (x - mu) * lax.rsqrt(var + eps) * g + b


def _make_fused_kernel(T):
    def kernel(x_ref, len_ref, wih_ref, whh_ref, blstm_ref,
               gmat_ref, mask_ref,
               wqkv_ref, bqkv_ref, wo_ref, w1_ref, b1_ref, w2_ref,
               wh2s_ref, bh2s_ref, vec_ref,
               logit_ref, gx_ref):
        # x_ref:   [T*S, E]  time-major rows (row t*S + s = word t of sentence s)
        # len_ref: [S, 1] i32 sentence lengths
        # gmat:    [N, S]   one-hot doc-grouping gather matrix (zero row = padding)
        # mask:    [N, N]   additive attention mask (0 allowed / -1e30 masked)
        # vec_ref: [6, D]   packed row vectors: bo, b2, ln1g, ln1b, ln2g, ln2b
        TS, E = x_ref.shape
        S = TS // T
        H = whh_ref.shape[0]            # H == d_model == D
        D = H
        whh = whh_ref[...]
        lens = len_ref[...]

        # ---------- 1) LSTM sentence encoder ----------
        # Hoist x @ Wih (+ bias) out of the recurrence: one MXU matmul instead
        # of T small ones on the serial critical path.
        gx_ref[...] = (jnp.dot(x_ref[...], wih_ref[...],
                               preferred_element_type=jnp.float32) + blstm_ref[...])

        def step(t, carry):
            h, c = carry
            off = pl.multiple_of(t * S, S)
            gates = gx_ref[pl.ds(off, S), :] + jnp.dot(
                h, whh, preferred_element_type=jnp.float32)        # [S, 4H]
            sig = jax.nn.sigmoid(gates)                            # i/f/o slabs
            i_g = sig[:, 0:H]
            f_g = sig[:, H:2 * H]
            o_g = sig[:, 3 * H:4 * H]
            g_g = jnp.tanh(gates[:, 2 * H:3 * H])                  # tanh only on g
            c_new = f_g * c + i_g * g_g
            h_new = o_g * jnp.tanh(c_new)
            m = t < lens                                           # [S, 1]
            return jnp.where(m, h_new, h), jnp.where(m, c_new, c)

        h0 = jnp.zeros((S, H), jnp.float32)
        c0 = jnp.zeros((S, H), jnp.float32)
        # Short static trip count -> fully unroll for LLO scheduling visibility.
        enc, _ = lax.fori_loop(0, T, step, (h0, c0), unroll=True)  # [S, H]

        # ---------- 2) doc-grouping gather, kept in VMEM ----------
        x = jnp.dot(gmat_ref[...], enc, preferred_element_type=jnp.float32)  # [N, D]

        # ---------- 3) transformer encoder layer (nhead == 1) ----------
        qkv = (jnp.dot(x, wqkv_ref[...], preferred_element_type=jnp.float32)
               + bqkv_ref[...])                                    # [N, 3D]
        q = qkv[:, 0:D]                 # q/bq pre-scaled by 1/sqrt(D) on host
        k = qkv[:, D:2 * D]
        v = qkv[:, 2 * D:3 * D]
        scores = lax.dot_general(q, k, (((1,), (1,)), ((), ())),
                                 preferred_element_type=jnp.float32)   # [N, N]
        scores = scores + mask_ref[...]            # block-diag + key-padding mask
        scores = scores - jnp.max(scores, axis=-1, keepdims=True)
        p = jnp.exp(scores)
        p = p / jnp.sum(p, axis=-1, keepdims=True)  # exact softmax denominator

        attn = jnp.dot(p, v, preferred_element_type=jnp.float32)
        attn = (jnp.dot(attn, wo_ref[...], preferred_element_type=jnp.float32)
                + vec_ref[0:1, :])                                  # + bo

        h1 = _layernorm(x + attn, vec_ref[2:3, :], vec_ref[3:4, :])
        f = jnp.maximum(
            jnp.dot(h1, w1_ref[...], preferred_element_type=jnp.float32) + b1_ref[...],
            0.0)
        f = (jnp.dot(f, w2_ref[...], preferred_element_type=jnp.float32)
             + vec_ref[1:2, :])                                     # + b2
        y = _layernorm(h1 + f, vec_ref[4:5, :], vec_ref[5:6, :])

        # ---------- 4) fused h2s epilogue (lane-dense 128-wide store) ----------
        logit_ref[...] = (jnp.dot(y, wh2s_ref[...], preferred_element_type=jnp.float32)
                          + bh2s_ref[...])

    return kernel


def fused_forward_call(x_flat, lengths, wih, whh, b_lstm, gmat, attn_mask,
                       wqkv, bqkv, wo, w1, b1, w2, wh2s, bh2s, vecs, *, T):
    TS, E = x_flat.shape
    S = TS // T
    H = whh.shape[0]
    N = gmat.shape[0]
    FF = w1.shape[1]
    C = wh2s.shape[1]
    cost = pl.CostEstimate(
        flops=int(2 * TS * (E + H) * 4 * H
                  + 2 * N * S * H
                  + 2 * N * H * (4 * H + 2 * N + 2 * FF + C)),
        transcendentals=int(5 * T * S * H + N * N),
        bytes_accessed=int(4 * (TS * E + (E + H) * 4 * H + N * S + N * N
                                + 5 * H * H + 2 * H * FF + H * C + N * C
                                + 16 * H + FF + C)),
    )
    return pl.pallas_call(
        _make_fused_kernel(T),
        out_shape=jax.ShapeDtypeStruct((N, C), jnp.float32),
        in_specs=[_VMEM] * 16,
        out_specs=_VMEM,
        scratch_shapes=[pltpu.VMEM((TS, 4 * H), jnp.float32)],
        cost_estimate=cost,
    )(x_flat, lengths, wih, whh, b_lstm, gmat, attn_mask,
      wqkv, bqkv, wo, w1, b1, w2, wh2s, bh2s, vecs)


if __name__ == "__main__":
    key = jax.random.PRNGKey(0)
    E = 32        # word embedding dim
    D = 32        # d_model == LSTM hidden size
    FF = 64       # transformer FFN dim
    C_PAD = 128   # h2s logits padded to a full lane width (real width = 2)

    # batch of 2 documents; sentence lengths per document
    doc_sent_lengths = [[5, 3, 8], [2, 7, 4, 6]]
    doc_sizes = [len(d) for d in doc_sent_lengths]              # [3, 4]
    sent_lengths = [l for d in doc_sent_lengths for l in d]     # 7 sentences
    S = len(sent_lengths)
    S_pad = ((S + 7) // 8) * 8      # pad sentences only to a sublane multiple (8)
    T = max(sent_lengths)           # max sentence length = 8
    B = len(doc_sizes)
    L_pad = max(doc_sizes)          # pad docs to max_doc_size ...
    while (B * L_pad) % 8:          # ... keeping N = B*L_pad a sublane multiple
        L_pad += 1
    N = B * L_pad

    keys = jax.random.split(key, 32)
    sentences = [jax.random.normal(keys[i], (l, E), jnp.float32)
                 for i, l in enumerate(sent_lengths)]

    # pad sentences into [S_pad, T, E], then time-major flattened [T*S_pad, E]
    x_pad = jnp.zeros((S_pad, T, E), jnp.float32)
    for i, s in enumerate(sentences):
        x_pad = x_pad.at[i, :s.shape[0], :].set(s)
    x_flat = jnp.transpose(x_pad, (1, 0, 2)).reshape(T * S_pad, E)
    lengths = jnp.array(sent_lengths + [0] * (S_pad - S),
                        jnp.int32).reshape(S_pad, 1)

    # deterministic parameter init
    kw = jax.random.split(keys[-1], 24)
    scale = 0.1
    wih = scale * jax.random.normal(kw[0], (E, 4 * D), jnp.float32)
    whh = scale * jax.random.normal(kw[1], (D, 4 * D), jnp.float32)
    b_lstm = scale * jax.random.normal(kw[2], (1, 4 * D), jnp.float32)

    wq = scale * jax.random.normal(kw[3], (D, D), jnp.float32)
    wk = scale * jax.random.normal(kw[4], (D, D), jnp.float32)
    wv = scale * jax.random.normal(kw[5], (D, D), jnp.float32)
    wo = scale * jax.random.normal(kw[6], (D, D), jnp.float32)
    w1 = scale * jax.random.normal(kw[7], (D, FF), jnp.float32)
    w2 = scale * jax.random.normal(kw[8], (FF, D), jnp.float32)
    w_h2s = scale * jax.random.normal(kw[9], (D, 2), jnp.float32)
    b_h2s = scale * jax.random.normal(kw[10], (1, 2), jnp.float32)
    bq = scale * jax.random.normal(kw[11], (1, D), jnp.float32)
    bk = scale * jax.random.normal(kw[12], (1, D), jnp.float32)
    bv = scale * jax.random.normal(kw[13], (1, D), jnp.float32)
    bo = scale * jax.random.normal(kw[14], (1, D), jnp.float32)
    b1 = scale * jax.random.normal(kw[15], (1, FF), jnp.float32)
    b2 = scale * jax.random.normal(kw[16], (1, D), jnp.float32)
    ln1g = jnp.ones((1, D), jnp.float32)
    ln1b = jnp.zeros((1, D), jnp.float32)
    ln2g = jnp.ones((1, D), jnp.float32)
    ln2b = jnp.zeros((1, D), jnp.float32)

    # fold the 1/sqrt(D) score scaling into wq/bq and pack Wq|Wk|Wv (perf feedback)
    inv_sqrt_d = float(D) ** -0.5
    wqkv = jnp.concatenate([wq * inv_sqrt_d, wk, wv], axis=1)   # [D, 3D]
    bqkv = jnp.concatenate([bq * inv_sqrt_d, bk, bv], axis=1)   # [1, 3D]
    # pack the six [1, D] row vectors into one input (perf feedback)
    vecs = jnp.concatenate([bo, b2, ln1g, ln1b, ln2g, ln2b], axis=0)  # [6, D]
    # h2s fused into the kernel epilogue, zero-padded to 128 lanes
    wh2s = jnp.zeros((D, C_PAD), jnp.float32).at[:, :2].set(w_h2s)
    bh2s = jnp.zeros((1, C_PAD), jnp.float32).at[:, :2].set(b_h2s)

    # static plans (same role as the Python grouping loops in Model.forward):
    #   gmat        - one-hot doc-grouping gather matrix    [N, S_pad]
    #   attn_mask   - block-diagonal + key-padding additive mask [N, N]
    #   boundary    - rows 0..doc_len-2 of each padded doc
    gmat_rows, valid, doc_of = [], [], []
    base = 0
    for bi, n in enumerate(doc_sizes):
        for p in range(L_pad):
            row = [0.0] * S_pad
            if p < n:
                row[base + p] = 1.0
            gmat_rows.append(row)
            valid.append(1.0 if p < n else 0.0)
            doc_of.append(bi)
        base += n
    gmat = jnp.array(gmat_rows, jnp.float32)
    attn_mask = jnp.array(
        [[0.0 if (doc_of[i] == doc_of[j] and valid[j] > 0.0) else -1e30
          for j in range(N)] for i in range(N)], jnp.float32)
    boundary = [bi * L_pad + p
                for bi, n in enumerate(doc_sizes) for p in range(n - 1)]
    boundary_idx = jnp.array(boundary, jnp.int32)

    @jax.jit
    def forward(x_flat, lengths, wih, whh, b_lstm, gmat, attn_mask,
                wqkv, bqkv, wo, w1, b1, w2, wh2s, bh2s, vecs, boundary_idx):
        # single fused kernel: LSTM -> in-kernel doc gather -> transformer -> h2s
        logits_full = fused_forward_call(
            x_flat, lengths, wih, whh, b_lstm, gmat, attn_mask,
            wqkv, bqkv, wo, w1, b1, w2, wh2s, bh2s, vecs, T=T)
        # boundary decisions: rows 0..doc_len-2 of each doc, first 2 lanes
        return jnp.take(logits_full, boundary_idx, axis=0)[:, :2]

    logits = forward(x_flat, lengths, wih, whh, b_lstm, gmat, attn_mask,
                     wqkv, bqkv, wo, w1, b1, w2, wh2s, bh2s, vecs, boundary_idx)
    logits = jax.block_until_ready(logits)
    assert logits.shape == (sum(doc_sizes) - B, 2)
    assert bool(jnp.all(jnp.isfinite(logits)))
    print("KERNEL_OK")
</pallas_src>

<mosaic_0001>
module attributes {stable_mosaic.version = 11 : i64} {
  func.func @kernel(%arg0: memref<64x32xf32, #tpu.memory_space<vmem>>, %arg1: memref<8x1xi32, #tpu.memory_space<vmem>>, %arg2: memref<32x128xf32, #tpu.memory_space<vmem>>, %arg3: memref<32x128xf32, #tpu.memory_space<vmem>>, %arg4: memref<1x128xf32, #tpu.memory_space<vmem>>, %arg5: memref<8x8xf32, #tpu.memory_space<vmem>>, %arg6: memref<8x8xf32, #tpu.memory_space<vmem>>, %arg7: memref<32x96xf32, #tpu.memory_space<vmem>>, %arg8: memref<1x96xf32, #tpu.memory_space<vmem>>, %arg9: memref<32x32xf32, #tpu.memory_space<vmem>>, %arg10: memref<32x64xf32, #tpu.memory_space<vmem>>, %arg11: memref<1x64xf32, #tpu.memory_space<vmem>>, %arg12: memref<64x32xf32, #tpu.memory_space<vmem>>, %arg13: memref<32x128xf32, #tpu.memory_space<vmem>>, %arg14: memref<1x128xf32, #tpu.memory_space<vmem>>, %arg15: memref<6x32xf32, #tpu.memory_space<vmem>>, %arg16: memref<8x128xf32, #tpu.memory_space<vmem>>, %arg17: memref<64x128xf32, #tpu.memory_space<vmem>>) attributes {dimension_semantics = [], scalar_prefetch = 0 : i64, scratch_operands = 1 : i64, tpu.core_type = #tpu.core_type<tc>} {
    %c0 = arith.constant 0 : index
    %c0_0 = arith.constant 0 : index
    %0 = vector.load %arg3[%c0, %c0_0] : memref<32x128xf32, #tpu.memory_space<vmem>>, vector<32x128xf32>
    %c0_1 = arith.constant 0 : index
    %c0_2 = arith.constant 0 : index
    %1 = vector.load %arg1[%c0_1, %c0_2] : memref<8x1xi32, #tpu.memory_space<vmem>>, vector<8x1xi32>
    %c0_3 = arith.constant 0 : index
    %c0_4 = arith.constant 0 : index
    %2 = vector.load %arg0[%c0_3, %c0_4] : memref<64x32xf32, #tpu.memory_space<vmem>>, vector<64x32xf32>
    %c0_5 = arith.constant 0 : index
    %c0_6 = arith.constant 0 : index
    %3 = vector.load %arg2[%c0_5, %c0_6] : memref<32x128xf32, #tpu.memory_space<vmem>>, vector<32x128xf32>
    %cst = arith.constant dense<0.000000e+00> : vector<64x128xf32>
    %4 = tpu.matmul %2, %3, %cst {dimension_numbers = #tpu.dot_dimension_numbers<[1], [0], [0], [1], [0, 0, 1, 1], [], []>} : vector<64x32xf32>, vector<32x128xf32>, vector<64x128xf32> -> vector<64x128xf32>
    %c0_7 = arith.constant 0 : index
    %c0_8 = arith.constant 0 : index
    %5 = vector.load %arg4[%c0_7, %c0_8] : memref<1x128xf32, #tpu.memory_space<vmem>>, vector<1x128xf32>
    %6 = vector.broadcast %5 : vector<1x128xf32> to vector<64x128xf32>
    %7 = arith.addf %4, %6 : vector<64x128xf32>
    %c0_9 = arith.constant 0 : index
    %c0_10 = arith.constant 0 : index
    %8 = vector.load %arg17[%c0_9, %c0_10] : memref<64x128xf32, #tpu.memory_space<vmem>>, vector<64x128xf32>
    tpu.vector_store %arg17[%c0_9, %c0_10], %7 {strides = array<i32>} : memref<64x128xf32, #tpu.memory_space<vmem>>, vector<64x128xf32>,
    %cst_11 = arith.constant 0.000000e+00 : f32
    %9 = vector.broadcast %cst_11 : f32 to vector<8x32xf32>
    %cst_12 = arith.constant 0.000000e+00 : f32
    %10 = vector.broadcast %cst_12 : f32 to vector<8x32xf32>
    %c0_i32 = arith.constant 0 : i32
    %c8_i32 = arith.constant 8 : i32
    %11 = arith.muli %c0_i32, %c8_i32 : i32
    %12 = tpu.assume_multiple %11, 8 : i32
    %13 = arith.index_cast %12 : i32 to index
    %c0_13 = arith.constant 0 : index
    %14 = vector.load %arg17[%13, %c0_13] : memref<64x128xf32, #tpu.memory_space<vmem>>, vector<8x128xf32>
    %cst_14 = arith.constant dense<0.000000e+00> : vector<8x128xf32>
    %15 = tpu.matmul %9, %0, %cst_14 {dimension_numbers = #tpu.dot_dimension_numbers<[1], [0], [0], [1], [0, 0, 1, 1], [], []>} : vector<8x32xf32>, vector<32x128xf32>, vector<8x128xf32> -> vector<8x128xf32>
    %16 = arith.addf %14, %15 : vector<8x128xf32>
    %17 = arith.negf %16 : vector<8x128xf32>
    %18 = math.exp %17 : vector<8x128xf32>
    %cst_15 = arith.constant 1.000000e+00 : f32
    %19 = vector.broadcast %cst_15 : f32 to vector<8x128xf32>
    %20 = arith.addf %19, %18 : vector<8x128xf32>
    %21 = arith.divf %19, %20 : vector<8x128xf32>
    %22 = vector.extract_strided_slice %21 {offsets = [0, 0], sizes = [8, 32], strides = [1, 1]} : vector<8x128xf32> to vector<8x32xf32>
    %23 = vector.extract_strided_slice %21 {offsets = [0, 32], sizes = [8, 32], strides = [1, 1]} : vector<8x128xf32> to vector<8x32xf32>
    %24 = vector.extract_strided_slice %21 {offsets = [0, 96], sizes = [8, 32], strides = [1, 1]} : vector<8x128xf32> to vector<8x32xf32>
    %25 = vector.extract_strided_slice %16 {offsets = [0, 64], sizes = [8, 32], strides = [1, 1]} : vector<8x128xf32> to vector<8x32xf32>
    %26 = math.tanh %25 : vector<8x32xf32>
    %27 = arith.mulf %23, %10 : vector<8x32xf32>
    %28 = arith.mulf %22, %26 : vector<8x32xf32>
    %29 = arith.addf %27, %28 : vector<8x32xf32>
    %30 = math.tanh %29 : vector<8x32xf32>
    %31 = arith.mulf %24, %30 : vector<8x32xf32>
    %32 = vector.broadcast %c0_i32 : i32 to vector<8x1xi32>
    %33 = arith.cmpi slt, %32, %1 : vector<8x1xi32>
    %34 = vector.shape_cast %33 : vector<8x1xi1> to vector<8x1xi1>
    %35 = vector.broadcast %34 : vector<8x1xi1> to vector<8x32xi1>
    %36 = arith.select %35, %31, %9 : vector<8x32xi1>, vector<8x32xf32>
    %37 = vector.shape_cast %33 : vector<8x1xi1> to vector<8x1xi1>
    %38 = vector.broadcast %37 : vector<8x1xi1> to vector<8x32xi1>
    %39 = arith.select %38, %29, %10 : vector<8x32xi1>, vector<8x32xf32>
    %c1_i32 = arith.constant 1 : i32
    %c8_i32_16 = arith.constant 8 : i32
    %40 = arith.muli %c1_i32, %c8_i32_16 : i32
    %41 = tpu.assume_multiple %40, 8 : i32
    %42 = arith.index_cast %41 : i32 to index
    %c0_17 = arith.constant 0 : index
    %43 = vector.load %arg17[%42, %c0_17] : memref<64x128xf32, #tpu.memory_space<vmem>>, vector<8x128xf32>
    %cst_18 = arith.constant dense<0.000000e+00> : vector<8x128xf32>
    %44 = tpu.matmul %36, %0, %cst_18 {dimension_numbers = #tpu.dot_dimension_numbers<[1], [0], [0], [1], [0, 0, 1, 1], [], []>} : vector<8x32xf32>, vector<32x128xf32>, vector<8x128xf32> -> vector<8x128xf32>
    %45 = arith.addf %43, %44 : vector<8x128xf32>
    %46 = arith.negf %45 : vector<8x128xf32>
    %47 = math.exp %46 : vector<8x128xf32>
    %cst_19 = arith.constant 1.000000e+00 : f32
    %48 = vector.broadcast %cst_19 : f32 to vector<8x128xf32>
    %49 = arith.addf %48, %47 : vector<8x128xf32>
    %50 = arith.divf %48, %49 : vector<8x128xf32>
    %51 = vector.extract_strided_slice %50 {offsets = [0, 0], sizes = [8, 32], strides = [1, 1]} : vector<8x128xf32> to vector<8x32xf32>
    %52 = vector.extract_strided_slice %50 {offsets = [0, 32], sizes = [8, 32], strides = [1, 1]} : vector<8x128xf32> to vector<8x32xf32>
    %53 = vector.extract_strided_slice %50 {offsets = [0, 96], sizes = [8, 32], strides = [1, 1]} : vector<8x128xf32> to vector<8x32xf32>
    %54 = vector.extract_strided_slice %45 {offsets = [0, 64], sizes = [8, 32], strides = [1, 1]} : vector<8x128xf32> to vector<8x32xf32>
    %55 = math.tanh %54 : vector<8x32xf32>
    %56 = arith.mulf %52, %39 : vector<8x32xf32>
    %57 = arith.mulf %51, %55 : vector<8x32xf32>
    %58 = arith.addf %56, %57 : vector<8x32xf32>
    %59 = math.tanh %58 : vector<8x32xf32>
    %60 = arith.mulf %53, %59 : vector<8x32xf32>
    %61 = vector.broadcast %c1_i32 : i32 to vector<8x1xi32>
    %62 = arith.cmpi slt, %61, %1 : vector<8x1xi32>
    %63 = vector.shape_cast %62 : vector<8x1xi1> to vector<8x1xi1>
    %64 = vector.broadcast %63 : vector<8x1xi1> to vector<8x32xi1>
    %65 = arith.select %64, %60, %36 : vector<8x32xi1>, vector<8x32xf32>
    %66 = vector.shape_cast %62 : vector<8x1xi1> to vector<8x1xi1>
    %67 = vector.broadcast %66 : vector<8x1xi1> to vector<8x32xi1>
    %68 = arith.select %67, %58, %39 : vector<8x32xi1>, vector<8x32xf32>
    %c2_i32 = arith.constant 2 : i32
    %c8_i32_20 = arith.constant 8 : i32
    %69 = arith.muli %c2_i32, %c8_i32_20 : i32
    %70 = tpu.assume_multiple %69, 8 : i32
    %71 = arith.index_cast %70 : i32 to index
    %c0_21 = arith.constant 0 : index
    %72 = vector.load %arg17[%71, %c0_21] : memref<64x128xf32, #tpu.memory_space<vmem>>, vector<8x128xf32>
    %cst_22 = arith.constant dense<0.000000e+00> : vector<8x128xf32>
    %73 = tpu.matmul %65, %0, %cst_22 {dimension_numbers = #tpu.dot_dimension_numbers<[1], [0], [0], [1], [0, 0, 1, 1], [], []>} : vector<8x32xf32>, vector<32x128xf32>, vector<8x128xf32> -> vector<8x128xf32>
    %74 = arith.addf %72, %73 : vector<8x128xf32>
    %75 = arith.negf %74 : vector<8x128xf32>
    %76 = math.exp %75 : vector<8x128xf32>
    %cst_23 = arith.constant 1.000000e+00 : f32
    %77 = vector.broadcast %cst_23 : f32 to vector<8x128xf32>
    %78 = arith.addf %77, %76 : vector<8x128xf32>
    %79 = arith.divf %77, %78 : vector<8x128xf32>
    %80 = vector.extract_strided_slice %79 {offsets = [0, 0], sizes = [8, 32], strides = [1, 1]} : vector<8x128xf32> to vector<8x32xf32>
    %81 = vector.extract_strided_slice %79 {offsets = [0, 32], sizes = [8, 32], strides = [1, 1]} : vector<8x128xf32> to vector<8x32xf32>
    %82 = vector.extract_strided_slice %79 {offsets = [0, 96], sizes = [8, 32], strides = [1, 1]} : vector<8x128xf32> to vector<8x32xf32>
    %83 = vector.extract_strided_slice %74 {offsets = [0, 64], sizes = [8, 32], strides = [1, 1]} : vector<8x128xf32> to vector<8x32xf32>
    %84 = math.tanh %83 : vector<8x32xf32>
    %85 = arith.mulf %81, %68 : vector<8x32xf32>
    %86 = arith.mulf %80, %84 : vector<8x32xf32>
    %87 = arith.addf %85, %86 : vector<8x32xf32>
    %88 = math.tanh %87 : vector<8x32xf32>
    %89 = arith.mulf %82, %88 : vector<8x32xf32>
    %90 = vector.broadcast %c2_i32 : i32 to vector<8x1xi32>
    %91 = arith.cmpi slt, %90, %1 : vector<8x1xi32>
    %92 = vector.shape_cast %91 : vector<8x1xi1> to vector<8x1xi1>
    %93 = vector.broadcast %92 : vector<8x1xi1> to vector<8x32xi1>
    %94 = arith.select %93, %89, %65 : vector<8x32xi1>, vector<8x32xf32>
    %95 = vector.shape_cast %91 : vector<8x1xi1> to vector<8x1xi1>
    %96 = vector.broadcast %95 : vector<8x1xi1> to vector<8x32xi1>
    %97 = arith.select %96, %87, %68 : vector<8x32xi1>, vector<8x32xf32>
    %c3_i32 = arith.constant 3 : i32
    %c8_i32_24 = arith.constant 8 : i32
    %98 = arith.muli %c3_i32, %c8_i32_24 : i32
    %99 = tpu.assume_multiple %98, 8 : i32
    %100 = arith.index_cast %99 : i32 to index
    %c0_25 = arith.constant 0 : index
    %101 = vector.load %arg17[%100, %c0_25] : memref<64x128xf32, #tpu.memory_space<vmem>>, vector<8x128xf32>
    %cst_26 = arith.constant dense<0.000000e+00> : vector<8x128xf32>
    %102 = tpu.matmul %94, %0, %cst_26 {dimension_numbers = #tpu.dot_dimension_numbers<[1], [0], [0], [1], [0, 0, 1, 1], [], []>} : vector<8x32xf32>, vector<32x128xf32>, vector<8x128xf32> -> vector<8x128xf32>
    %103 = arith.addf %101, %102 : vector<8x128xf32>
    %104 = arith.negf %103 : vector<8x128xf32>
    %105 = math.exp %104 : vector<8x128xf32>
    %cst_27 = arith.constant 1.000000e+00 : f32
    %106 = vector.broadcast %cst_27 : f32 to vector<8x128xf32>
    %107 = arith.addf %106, %105 : vector<8x128xf32>
    %108 = arith.divf %106, %107 : vector<8x128xf32>
    %109 = vector.extract_strided_slice %108 {offsets = [0, 0], sizes = [8, 32], strides = [1, 1]} : vector<8x128xf32> to vector<8x32xf32>
    %110 = vector.extract_strided_slice %108 {offsets = [0, 32], sizes = [8, 32], strides = [1, 1]} : vector<8x128xf32> to vector<8x32xf32>
    %111 = vector.extract_strided_slice %108 {offsets = [0, 96], sizes = [8, 32], strides = [1, 1]} : vector<8x128xf32> to vector<8x32xf32>
    %112 = vector.extract_strided_slice %103 {offsets = [0, 64], sizes = [8, 32], strides = [1, 1]} : vector<8x128xf32> to vector<8x32xf32>
    %113 = math.tanh %112 : vector<8x32xf32>
    %114 = arith.mulf %110, %97 : vector<8x32xf32>
    %115 = arith.mulf %109, %113 : vector<8x32xf32>
    %116 = arith.addf %114, %115 : vector<8x32xf32>
    %117 = math.tanh %116 : vector<8x32xf32>
    %118 = arith.mulf %111, %117 : vector<8x32xf32>
    %119 = vector.broadcast %c3_i32 : i32 to vector<8x1xi32>
    %120 = arith.cmpi slt, %119, %1 : vector<8x1xi32>
    %121 = vector.shape_cast %120 : vector<8x1xi1> to vector<8x1xi1>
    %122 = vector.broadcast %121 : vector<8x1xi1> to vector<8x32xi1>
    %123 = arith.select %122, %118, %94 : vector<8x32xi1>, vector<8x32xf32>
    %124 = vector.shape_cast %120 : vector<8x1xi1> to vector<8x1xi1>
    %125 = vector.broadcast %124 : vector<8x1xi1> to vector<8x32xi1>
    %126 = arith.select %125, %116, %97 : vector<8x32xi1>, vector<8x32xf32>
    %c4_i32 = arith.constant 4 : i32
    %c8_i32_28 = arith.constant 8 : i32
    %127 = arith.muli %c4_i32, %c8_i32_28 : i32
    %128 = tpu.assume_multiple %127, 8 : i32
    %129 = arith.index_cast %128 : i32 to index
    %c0_29 = arith.constant 0 : index
    %130 = vector.load %arg17[%129, %c0_29] : memref<64x128xf32, #tpu.memory_space<vmem>>, vector<8x128xf32>
    %cst_30 = arith.constant dense<0.000000e+00> : vector<8x128xf32>
    %131 = tpu.matmul %123, %0, %cst_30 {dimension_numbers = #tpu.dot_dimension_numbers<[1], [0], [0], [1], [0, 0, 1, 1], [], []>} : vector<8x32xf32>, vector<32x128xf32>, vector<8x128xf32> -> vector<8x128xf32>
    %132 = arith.addf %130, %131 : vector<8x128xf32>
    %133 = arith.negf %132 : vector<8x128xf32>
    %134 = math.exp %133 : vector<8x128xf32>
    %cst_31 = arith.constant 1.000000e+00 : f32
    %135 = vector.broadcast %cst_31 : f32 to vector<8x128xf32>
    %136 = arith.addf %135, %134 : vector<8x128xf32>
    %137 = arith.divf %135, %136 : vector<8x128xf32>
    %138 = vector.extract_strided_slice %137 {offsets = [0, 0], sizes = [8, 32], strides = [1, 1]} : vector<8x128xf32> to vector<8x32xf32>
    %139 = vector.extract_strided_slice %137 {offsets = [0, 32], sizes = [8, 32], strides = [1, 1]} : vector<8x128xf32> to vector<8x32xf32>
    %140 = vector.extract_strided_slice %137 {offsets = [0, 96], sizes = [8, 32], strides = [1, 1]} : vector<8x128xf32> to vector<8x32xf32>
    %141 = vector.extract_strided_slice %132 {offsets = [0, 64], sizes = [8, 32], strides = [1, 1]} : vector<8x128xf32> to vector<8x32xf32>
    %142 = math.tanh %141 : vector<8x32xf32>
    %143 = arith.mulf %139, %126 : vector<8x32xf32>
    %144 = arith.mulf %138, %142 : vector<8x32xf32>
    %145 = arith.addf %143, %144 : vector<8x32xf32>
    %146 = math.tanh %145 : vector<8x32xf32>
    %147 = arith.mulf %140, %146 : vector<8x32xf32>
    %148 = vector.broadcast %c4_i32 : i32 to vector<8x1xi32>
    %149 = arith.cmpi slt, %148, %1 : vector<8x1xi32>
    %150 = vector.shape_cast %149 : vector<8x1xi1> to vector<8x1xi1>
    %151 = vector.broadcast %150 : vector<8x1xi1> to vector<8x32xi1>
    %152 = arith.select %151, %147, %123 : vector<8x32xi1>, vector<8x32xf32>
    %153 = vector.shape_cast %149 : vector<8x1xi1> to vector<8x1xi1>
    %154 = vector.broadcast %153 : vector<8x1xi1> to vector<8x32xi1>
    %155 = arith.select %154, %145, %126 : vector<8x32xi1>, vector<8x32xf32>
    %c5_i32 = arith.constant 5 : i32
    %c8_i32_32 = arith.constant 8 : i32
    %156 = arith.muli %c5_i32, %c8_i32_32 : i32
    %157 = tpu.assume_multiple %156, 8 : i32
    %158 = arith.index_cast %157 : i32 to index
    %c0_33 = arith.constant 0 : index
    %159 = vector.load %arg17[%158, %c0_33] : memref<64x128xf32, #tpu.memory_space<vmem>>, vector<8x128xf32>
    %cst_34 = arith.constant dense<0.000000e+00> : vector<8x128xf32>
    %160 = tpu.matmul %152, %0, %cst_34 {dimension_numbers = #tpu.dot_dimension_numbers<[1], [0], [0], [1], [0, 0, 1, 1], [], []>} : vector<8x32xf32>, vector<32x128xf32>, vector<8x128xf32> -> vector<8x128xf32>
    %161 = arith.addf %159, %160 : vector<8x128xf32>
    %162 = arith.negf %161 : vector<8x128xf32>
    %163 = math.exp %162 : vector<8x128xf32>
    %cst_35 = arith.constant 1.000000e+00 : f32
    %164 = vector.broadcast %cst_35 : f32 to vector<8x128xf32>
    %165 = arith.addf %164, %163 : vector<8x128xf32>
    %166 = arith.divf %164, %165 : vector<8x128xf32>
    %167 = vector.extract_strided_slice %166 {offsets = [0, 0], sizes = [8, 32], strides = [1, 1]} : vector<8x128xf32> to vector<8x32xf32>
    %168 = vector.extract_strided_slice %166 {offsets = [0, 32], sizes = [8, 32], strides = [1, 1]} : vector<8x128xf32> to vector<8x32xf32>
    %169 = vector.extract_strided_slice %166 {offsets = [0, 96], sizes = [8, 32], strides = [1, 1]} : vector<8x128xf32> to vector<8x32xf32>
    %170 = vector.extract_strided_slice %161 {offsets = [0, 64], sizes = [8, 32], strides = [1, 1]} : vector<8x128xf32> to vector<8x32xf32>
    %171 = math.tanh %170 : vector<8x32xf32>
    %172 = arith.mulf %168, %155 : vector<8x32xf32>
    %173 = arith.mulf %167, %171 : vector<8x32xf32>
    %174 = arith.addf %172, %173 : vector<8x32xf32>
    %175 = math.tanh %174 : vector<8x32xf32>
    %176 = arith.mulf %169, %175 : vector<8x32xf32>
    %177 = vector.broadcast %c5_i32 : i32 to vector<8x1xi32>
    %178 = arith.cmpi slt, %177, %1 : vector<8x1xi32>
    %179 = vector.shape_cast %178 : vector<8x1xi1> to vector<8x1xi1>
    %180 = vector.broadcast %179 : vector<8x1xi1> to vector<8x32xi1>
    %181 = arith.select %180, %176, %152 : vector<8x32xi1>, vector<8x32xf32>
    %182 = vector.shape_cast %178 : vector<8x1xi1> to vector<8x1xi1>
    %183 = vector.broadcast %182 : vector<8x1xi1> to vector<8x32xi1>
    %184 = arith.select %183, %174, %155 : vector<8x32xi1>, vector<8x32xf32>
    %c6_i32 = arith.constant 6 : i32
    %c8_i32_36 = arith.constant 8 : i32
    %185 = arith.muli %c6_i32, %c8_i32_36 : i32
    %186 = tpu.assume_multiple %185, 8 : i32
    %187 = arith.index_cast %186 : i32 to index
    %c0_37 = arith.constant 0 : index
    %188 = vector.load %arg17[%187, %c0_37] : memref<64x128xf32, #tpu.memory_space<vmem>>, vector<8x128xf32>
    %cst_38 = arith.constant dense<0.000000e+00> : vector<8x128xf32>
    %189 = tpu.matmul %181, %0, %cst_38 {dimension_numbers = #tpu.dot_dimension_numbers<[1], [0], [0], [1], [0, 0, 1, 1], [], []>} : vector<8x32xf32>, vector<32x128xf32>, vector<8x128xf32> -> vector<8x128xf32>
    %190 = arith.addf %188, %189 : vector<8x128xf32>
    %191 = arith.negf %190 : vector<8x128xf32>
    %192 = math.exp %191 : vector<8x128xf32>
    %cst_39 = arith.constant 1.000000e+00 : f32
    %193 = vector.broadcast %cst_39 : f32 to vector<8x128xf32>
    %194 = arith.addf %193, %192 : vector<8x128xf32>
    %195 = arith.divf %193, %194 : vector<8x128xf32>
    %196 = vector.extract_strided_slice %195 {offsets = [0, 0], sizes = [8, 32], strides = [1, 1]} : vector<8x128xf32> to vector<8x32xf32>
    %197 = vector.extract_strided_slice %195 {offsets = [0, 32], sizes = [8, 32], strides = [1, 1]} : vector<8x128xf32> to vector<8x32xf32>
    %198 = vector.extract_strided_slice %195 {offsets = [0, 96], sizes = [8, 32], strides = [1, 1]} : vector<8x128xf32> to vector<8x32xf32>
    %199 = vector.extract_strided_slice %190 {offsets = [0, 64], sizes = [8, 32], strides = [1, 1]} : vector<8x128xf32> to vector<8x32xf32>
    %200 = math.tanh %199 : vector<8x32xf32>
    %201 = arith.mulf %197, %184 : vector<8x32xf32>
    %202 = arith.mulf %196, %200 : vector<8x32xf32>
    %203 = arith.addf %201, %202 : vector<8x32xf32>
    %204 = math.tanh %203 : vector<8x32xf32>
    %205 = arith.mulf %198, %204 : vector<8x32xf32>
    %206 = vector.broadcast %c6_i32 : i32 to vector<8x1xi32>
    %207 = arith.cmpi slt, %206, %1 : vector<8x1xi32>
    %208 = vector.shape_cast %207 : vector<8x1xi1> to vector<8x1xi1>
    %209 = vector.broadcast %208 : vector<8x1xi1> to vector<8x32xi1>
    %210 = arith.select %209, %205, %181 : vector<8x32xi1>, vector<8x32xf32>
    %211 = vector.shape_cast %207 : vector<8x1xi1> to vector<8x1xi1>
    %212 = vector.broadcast %211 : vector<8x1xi1> to vector<8x32xi1>
    %213 = arith.select %212, %203, %184 : vector<8x32xi1>, vector<8x32xf32>
    %c7_i32 = arith.constant 7 : i32
    %c8_i32_40 = arith.constant 8 : i32
    %214 = arith.muli %c7_i32, %c8_i32_40 : i32
    %215 = tpu.assume_multiple %214, 8 : i32
    %216 = arith.index_cast %215 : i32 to index
    %c0_41 = arith.constant 0 : index
    %217 = vector.load %arg17[%216, %c0_41] : memref<64x128xf32, #tpu.memory_space<vmem>>, vector<8x128xf32>
    %cst_42 = arith.constant dense<0.000000e+00> : vector<8x128xf32>
    %218 = tpu.matmul %210, %0, %cst_42 {dimension_numbers = #tpu.dot_dimension_numbers<[1], [0], [0], [1], [0, 0, 1, 1], [], []>} : vector<8x32xf32>, vector<32x128xf32>, vector<8x128xf32> -> vector<8x128xf32>
    %219 = arith.addf %217, %218 : vector<8x128xf32>
    %220 = arith.negf %219 : vector<8x128xf32>
    %221 = math.exp %220 : vector<8x128xf32>
    %cst_43 = arith.constant 1.000000e+00 : f32
    %222 = vector.broadcast %cst_43 : f32 to vector<8x128xf32>
    %223 = arith.addf %222, %221 : vector<8x128xf32>
    %224 = arith.divf %222, %223 : vector<8x128xf32>
    %225 = vector.extract_strided_slice %224 {offsets = [0, 0], sizes = [8, 32], strides = [1, 1]} : vector<8x128xf32> to vector<8x32xf32>
    %226 = vector.extract_strided_slice %224 {offsets = [0, 32], sizes = [8, 32], strides = [1, 1]} : vector<8x128xf32> to vector<8x32xf32>
    %227 = vector.extract_strided_slice %224 {offsets = [0, 96], sizes = [8, 32], strides = [1, 1]} : vector<8x128xf32> to vector<8x32xf32>
    %228 = vector.extract_strided_slice %219 {offsets = [0, 64], sizes = [8, 32], strides = [1, 1]} : vector<8x128xf32> to vector<8x32xf32>
    %229 = math.tanh %228 : vector<8x32xf32>
    %230 = arith.mulf %226, %213 : vector<8x32xf32>
    %231 = arith.mulf %225, %229 : vector<8x32xf32>
    %232 = arith.addf %230, %231 : vector<8x32xf32>
    %233 = math.tanh %232 : vector<8x32xf32>
    %234 = arith.mulf %227, %233 : vector<8x32xf32>
    %235 = vector.broadcast %c7_i32 : i32 to vector<8x1xi32>
    %236 = arith.cmpi slt, %235, %1 : vector<8x1xi32>
    %237 = vector.shape_cast %236 : vector<8x1xi1> to vector<8x1xi1>
    %238 = vector.broadcast %237 : vector<8x1xi1> to vector<8x32xi1>
    %239 = arith.select %238, %234, %210 : vector<8x32xi1>, vector<8x32xf32>
    %240 = vector.shape_cast %236 : vector<8x1xi1> to vector<8x1xi1>
    %241 = vector.broadcast %240 : vector<8x1xi1> to vector<8x32xi1>
    %242 = arith.select %241, %232, %213 : vector<8x32xi1>, vector<8x32xf32>
    %c8_i32_44 = arith.constant 8 : i32
    %c0_45 = arith.constant 0 : index
    %c0_46 = arith.constant 0 : index
    %243 = vector.load %arg5[%c0_45, %c0_46] : memref<8x8xf32, #tpu.memory_space<vmem>>, vector<8x8xf32>
    %cst_47 = arith.constant dense<0.000000e+00> : vector<8x32xf32>
    %244 = tpu.matmul %243, %239, %cst_47 {dimension_numbers = #tpu.dot_dimension_numbers<[1], [0], [0], [1], [0, 0, 1, 1], [], []>} : vector<8x8xf32>, vector<8x32xf32>, vector<8x32xf32> -> vector<8x32xf32>
    %c0_48 = arith.constant 0 : index
    %c0_49 = arith.constant 0 : index
    %245 = vector.load %arg7[%c0_48, %c0_49] : memref<32x96xf32, #tpu.memory_space<vmem>>, vector<32x96xf32>
    %cst_50 = arith.constant dense<0.000000e+00> : vector<8x96xf32>
    %246 = tpu.matmul %244, %245, %cst_50 {dimension_numbers = #tpu.dot_dimension_numbers<[1], [0], [0], [1], [0, 0, 1, 1], [], []>} : vector<8x32xf32>, vector<32x96xf32>, vector<8x96xf32> -> vector<8x96xf32>
    %c0_51 = arith.constant 0 : index
    %c0_52 = arith.constant 0 : index
    %247 = vector.load %arg8[%c0_51, %c0_52] : memref<1x96xf32, #tpu.memory_space<vmem>>, vector<1x96xf32>
    %248 = vector.broadcast %247 : vector<1x96xf32> to vector<8x96xf32>
    %249 = arith.addf %246, %248 : vector<8x96xf32>
    %250 = vector.extract_strided_slice %249 {offsets = [0, 0], sizes = [8, 32], strides = [1, 1]} : vector<8x96xf32> to vector<8x32xf32>
    %251 = vector.extract_strided_slice %249 {offsets = [0, 32], sizes = [8, 32], strides = [1, 1]} : vector<8x96xf32> to vector<8x32xf32>
    %252 = vector.extract_strided_slice %249 {offsets = [0, 64], sizes = [8, 32], strides = [1, 1]} : vector<8x96xf32> to vector<8x32xf32>
    %cst_53 = arith.constant dense<0.000000e+00> : vector<8x8xf32>
    %253 = tpu.matmul %250, %251, %cst_53 {dimension_numbers = #tpu.dot_dimension_numbers<[1], [1], [0], [0], [0, 0, 1, 0], [], []>} : vector<8x32xf32>, vector<8x32xf32>, vector<8x8xf32> -> vector<8x8xf32>
    %c0_54 = arith.constant 0 : index
    %c0_55 = arith.constant 0 : index
    %254 = vector.load %arg6[%c0_54, %c0_55] : memref<8x8xf32, #tpu.memory_space<vmem>>, vector<8x8xf32>
    %255 = arith.addf %253, %254 : vector<8x8xf32>
    %cst_56 = arith.constant dense<0xFF800000> : vector<8xf32>
    %256 = vector.multi_reduction <maximumf>, %255, %cst_56 [1] : vector<8x8xf32> to vector<8xf32>
    %257 = vector.shape_cast %256 : vector<8xf32> to vector<8x1xf32>
    %258 = vector.broadcast %257 : vector<8x1xf32> to vector<8x8xf32>
    %259 = arith.subf %255, %258 : vector<8x8xf32>
    %260 = math.exp %259 : vector<8x8xf32>
    %cst_57 = arith.constant dense<0.000000e+00> : vector<8xf32>
    %261 = vector.multi_reduction <add>, %260, %cst_57 [1] : vector<8x8xf32> to vector<8xf32>
    %262 = vector.shape_cast %261 : vector<8xf32> to vector<8x1xf32>
    %263 = vector.broadcast %262 : vector<8x1xf32> to vector<8x8xf32>
    %264 = arith.divf %260, %263 : vector<8x8xf32>
    %cst_58 = arith.constant dense<0.000000e+00> : vector<8x32xf32>
    %265 = tpu.matmul %264, %252, %cst_58 {dimension_numbers = #tpu.dot_dimension_numbers<[1], [0], [0], [1], [0, 0, 1, 1], [], []>} : vector<8x8xf32>, vector<8x32xf32>, vector<8x32xf32> -> vector<8x32xf32>
    %c0_59 = arith.constant 0 : index
    %c0_60 = arith.constant 0 : index
    %266 = vector.load %arg9[%c0_59, %c0_60] : memref<32x32xf32, #tpu.memory_space<vmem>>, vector<32x32xf32>
    %cst_61 = arith.constant dense<0.000000e+00> : vector<8x32xf32>
    %267 = tpu.matmul %265, %266, %cst_61 {dimension_numbers = #tpu.dot_dimension_numbers<[1], [0], [0], [1], [0, 0, 1, 1], [], []>} : vector<8x32xf32>, vector<32x32xf32>, vector<8x32xf32> -> vector<8x32xf32>
    %c0_62 = arith.constant 0 : index
    %c0_63 = arith.constant 0 : index
    %268 = vector.load %arg15[%c0_62, %c0_63] : memref<6x32xf32, #tpu.memory_space<vmem>>, vector<1x32xf32>
    %269 = vector.broadcast %268 : vector<1x32xf32> to vector<8x32xf32>
    %270 = arith.addf %267, %269 : vector<8x32xf32>
    %271 = arith.addf %244, %270 : vector<8x32xf32>
    %c2 = arith.constant 2 : index
    %c0_64 = arith.constant 0 : index
    %272 = vector.load %arg15[%c2, %c0_64] : memref<6x32xf32, #tpu.memory_space<vmem>>, vector<1x32xf32>
    %c3 = arith.constant 3 : index
    %c0_65 = arith.constant 0 : index
    %273 = vector.load %arg15[%c3, %c0_65] : memref<6x32xf32, #tpu.memory_space<vmem>>, vector<1x32xf32>
    %cst_66 = arith.constant dense<0.000000e+00> : vector<8xf32>
    %274 = vector.multi_reduction <add>, %271, %cst_66 [1] : vector<8x32xf32> to vector<8xf32>
    %275 = vector.shape_cast %274 : vector<8xf32> to vector<8x1xf32>
    %cst_67 = arith.constant 3.200000e+01 : f32
    %276 = vector.broadcast %cst_67 : f32 to vector<8x1xf32>
    %277 = arith.divf %275, %276 : vector<8x1xf32>
    %278 = vector.broadcast %277 : vector<8x1xf32> to vector<8x32xf32>
    %279 = arith.subf %271, %278 : vector<8x32xf32>
    %280 = arith.mulf %279, %279 : vector<8x32xf32>
    %cst_68 = arith.constant dense<0.000000e+00> : vector<8xf32>
    %281 = vector.multi_reduction <add>, %280, %cst_68 [1] : vector<8x32xf32> to vector<8xf32>
    %282 = vector.shape_cast %281 : vector<8xf32> to vector<8x1xf32>
    %cst_69 = arith.constant 3.200000e+01 : f32
    %283 = vector.broadcast %cst_69 : f32 to vector<8x1xf32>
    %284 = arith.divf %282, %283 : vector<8x1xf32>
    %285 = vector.broadcast %277 : vector<8x1xf32> to vector<8x32xf32>
    %286 = arith.subf %271, %285 : vector<8x32xf32>
    %cst_70 = arith.constant 9.99999974E-6 : f32
    %287 = vector.broadcast %cst_70 : f32 to vector<8x1xf32>
    %288 = arith.addf %284, %287 : vector<8x1xf32>
    %289 = math.rsqrt %288 : vector<8x1xf32>
    %290 = vector.broadcast %289 : vector<8x1xf32> to vector<8x32xf32>
    %291 = arith.mulf %286, %290 : vector<8x32xf32>
    %292 = vector.broadcast %272 : vector<1x32xf32> to vector<8x32xf32>
    %293 = arith.mulf %291, %292 : vector<8x32xf32>
    %294 = vector.broadcast %273 : vector<1x32xf32> to vector<8x32xf32>
    %295 = arith.addf %293, %294 : vector<8x32xf32>
    %c0_71 = arith.constant 0 : index
    %c0_72 = arith.constant 0 : index
    %296 = vector.load %arg10[%c0_71, %c0_72] : memref<32x64xf32, #tpu.memory_space<vmem>>, vector<32x64xf32>
    %cst_73 = arith.constant dense<0.000000e+00> : vector<8x64xf32>
    %297 = tpu.matmul %295, %296, %cst_73 {dimension_numbers = #tpu.dot_dimension_numbers<[1], [0], [0], [1], [0, 0, 1, 1], [], []>} : vector<8x32xf32>, vector<32x64xf32>, vector<8x64xf32> -> vector<8x64xf32>
    %c0_74 = arith.constant 0 : index
    %c0_75 = arith.constant 0 : index
    %298 = vector.load %arg11[%c0_74, %c0_75] : memref<1x64xf32, #tpu.memory_space<vmem>>, vector<1x64xf32>
    %299 = vector.broadcast %298 : vector<1x64xf32> to vector<8x64xf32>
    %300 = arith.addf %297, %299 : vector<8x64xf32>
    %cst_76 = arith.constant 0.000000e+00 : f32
    %301 = vector.broadcast %cst_76 : f32 to vector<8x64xf32>
    %302 = arith.maximumf %300, %301 : vector<8x64xf32>
    %c0_77 = arith.constant 0 : index
    %c0_78 = arith.constant 0 : index
    %303 = vector.load %arg12[%c0_77, %c0_78] : memref<64x32xf32, #tpu.memory_space<vmem>>, vector<64x32xf32>
    %cst_79 = arith.constant dense<0.000000e+00> : vector<8x32xf32>
    %304 = tpu.matmul %302, %303, %cst_79 {dimension_numbers = #tpu.dot_dimension_numbers<[1], [0], [0], [1], [0, 0, 1, 1], [], []>} : vector<8x64xf32>, vector<64x32xf32>, vector<8x32xf32> -> vector<8x32xf32>
    %c1 = arith.constant 1 : index
    %c0_80 = arith.constant 0 : index
    %305 = vector.load %arg15[%c1, %c0_80] : memref<6x32xf32, #tpu.memory_space<vmem>>, vector<1x32xf32>
    %306 = vector.broadcast %305 : vector<1x32xf32> to vector<8x32xf32>
    %307 = arith.addf %304, %306 : vector<8x32xf32>
    %308 = arith.addf %295, %307 : vector<8x32xf32>
    %c4 = arith.constant 4 : index
    %c0_81 = arith.constant 0 : index
    %309 = vector.load %arg15[%c4, %c0_81] : memref<6x32xf32, #tpu.memory_space<vmem>>, vector<1x32xf32>
    %c5 = arith.constant 5 : index
    %c0_82 = arith.constant 0 : index
    %310 = vector.load %arg15[%c5, %c0_82] : memref<6x32xf32, #tpu.memory_space<vmem>>, vector<1x32xf32>
    %cst_83 = arith.constant dense<0.000000e+00> : vector<8xf32>
    %311 = vector.multi_reduction <add>, %308, %cst_83 [1] : vector<8x32xf32> to vector<8xf32>
    %312 = vector.shape_cast %311 : vector<8xf32> to vector<8x1xf32>
    %cst_84 = arith.constant 3.200000e+01 : f32
    %313 = vector.broadcast %cst_84 : f32 to vector<8x1xf32>
    %314 = arith.divf %312, %313 : vector<8x1xf32>
    %315 = vector.broadcast %314 : vector<8x1xf32> to vector<8x32xf32>
    %316 = arith.subf %308, %315 : vector<8x32xf32>
    %317 = arith.mulf %316, %316 : vector<8x32xf32>
    %cst_85 = arith.constant dense<0.000000e+00> : vector<8xf32>
    %318 = vector.multi_reduction <add>, %317, %cst_85 [1] : vector<8x32xf32> to vector<8xf32>
    %319 = vector.shape_cast %318 : vector<8xf32> to vector<8x1xf32>
    %cst_86 = arith.constant 3.200000e+01 : f32
    %320 = vector.broadcast %cst_86 : f32 to vector<8x1xf32>
    %321 = arith.divf %319, %320 : vector<8x1xf32>
    %322 = vector.broadcast %314 : vector<8x1xf32> to vector<8x32xf32>
    %323 = arith.subf %308, %322 : vector<8x32xf32>
    %cst_87 = arith.constant 9.99999974E-6 : f32
    %324 = vector.broadcast %cst_87 : f32 to vector<8x1xf32>
    %325 = arith.addf %321, %324 : vector<8x1xf32>
    %326 = math.rsqrt %325 : vector<8x1xf32>
    %327 = vector.broadcast %326 : vector<8x1xf32> to vector<8x32xf32>
    %328 = arith.mulf %323, %327 : vector<8x32xf32>
    %329 = vector.broadcast %309 : vector<1x32xf32> to vector<8x32xf32>
    %330 = arith.mulf %328, %329 : vector<8x32xf32>
    %331 = vector.broadcast %310 : vector<1x32xf32> to vector<8x32xf32>
    %332 = arith.addf %330, %331 : vector<8x32xf32>
    %c0_88 = arith.constant 0 : index
    %c0_89 = arith.constant 0 : index
    %333 = vector.load %arg13[%c0_88, %c0_89] : memref<32x128xf32, #tpu.memory_space<vmem>>, vector<32x128xf32>
    %cst_90 = arith.constant dense<0.000000e+00> : vector<8x128xf32>
    %334 = tpu.matmul %332, %333, %cst_90 {dimension_numbers = #tpu.dot_dimension_numbers<[1], [0], [0], [1], [0, 0, 1, 1], [], []>} : vector<8x32xf32>, vector<32x128xf32>, vector<8x128xf32> -> vector<8x128xf32>
    %c0_91 = arith.constant 0 : index
    %c0_92 = arith.constant 0 : index
    %335 = vector.load %arg14[%c0_91, %c0_92] : memref<1x128xf32, #tpu.memory_space<vmem>>, vector<1x128xf32>
    %336 = vector.broadcast %335 : vector<1x128xf32> to vector<8x128xf32>
    %337 = arith.addf %334, %336 : vector<8x128xf32>
    %c0_93 = arith.constant 0 : index
    %c0_94 = arith.constant 0 : index
    %338 = vector.load %arg16[%c0_93, %c0_94] : memref<8x128xf32, #tpu.memory_space<vmem>>, vector<8x128xf32>
    tpu.vector_store %arg16[%c0_93, %c0_94], %337 {strides = array<i32>} : memref<8x128xf32, #tpu.memory_space<vmem>>, vector<8x128xf32>,
    return
  }
}

</mosaic_0001>

<llo_original>
// kernel: forward.1
$region0: #{forward.1}
  #allocation0 [shape = 'u32[]', space=smem, size = 0x4, offset = 0x4, fixed_abs, tag = 'smem constant byte address 0x4 - core index']
  #allocation1 [shape = 'u32[144,128]{1,0:T(1,128)}', space=vmem, size = 0x12000, scoped, tag = 'internal scratch']
  #allocation2 [shape = 'f32[64,128]{1,0:T(8,128)}', space=vmem, size = 0x8000, scoped, tag = 'scratch operand']
  %s0 = inlined_call_operand.vmem [shape: f32[64,32], index: 0, kind: input, shape index: {}]
  %s1 = inlined_call_operand.vmem [shape: s32[8,1], index: 1, kind: input, shape index: {}]
  %s2 = inlined_call_operand.vmem [shape: f32[32,128], index: 2, kind: input, shape index: {}]
  %s3 = inlined_call_operand.vmem [shape: f32[32,128], index: 3, kind: input, shape index: {}]
  %s4 = inlined_call_operand.vmem [shape: f32[1,128], index: 4, kind: input, shape index: {}]
  %s5 = inlined_call_operand.vmem [shape: f32[8,8], index: 5, kind: input, shape index: {}]
  %s6 = inlined_call_operand.vmem [shape: f32[8,8], index: 6, kind: input, shape index: {}]
  %s7 = inlined_call_operand.vmem [shape: f32[32,96], index: 7, kind: input, shape index: {}]
  %s8 = inlined_call_operand.vmem [shape: f32[1,96], index: 8, kind: input, shape index: {}]
  %s9 = inlined_call_operand.vmem [shape: f32[32,32], index: 9, kind: input, shape index: {}]
  %s10 = inlined_call_operand.vmem [shape: f32[32,64], index: 10, kind: input, shape index: {}]
  %s11 = inlined_call_operand.vmem [shape: f32[1,64], index: 11, kind: input, shape index: {}]
  %s12 = inlined_call_operand.vmem [shape: f32[64,32], index: 12, kind: input, shape index: {}]
  %s13 = inlined_call_operand.hbm [shape: f32[32,128], index: 13, kind: input, shape index: {}]
  %s14 = inlined_call_operand.vmem [shape: f32[1,128], index: 14, kind: input, shape index: {}]
  %s15 = inlined_call_operand.vmem [shape: f32[6,32], index: 15, kind: input, shape index: {}]
  %s16 = inlined_call_operand.vmem [shape: f32[8,128], index: 16, kind: output, shape index: {}]
  %s17 = sld [smem:[#allocation0]]
  $region78: #{forward.1} parent=0
    _
  %s19 = ssub.s32 1, %s17
  %s20 = scalar_select 0, %s19, %s17
  $region1: #{forward.1} parent=0
    #allocation3 [shape = 'u8[16384]{0}', space=vmem, size = 0x4000, scoped, tag = 'input window, operand 13, single buffered']
    #allocation4 [shape = 's32[1]{0}', space=sflag, size = 0x4, scoped, tag = 'scoped memory for forward.1']
    %21 = vsyncpa [#allocation4], 0
    // Predicated region
    $region2: #{forward.1} parent=1 // pred_check
      _
    $region3: #{forward.1} parent=1 // pred_check_branch
      %23 = sbr.rel (0) target = $region5
    $region4: #{forward.1} parent=1 // pred_region
      _
    $region5: #{forward.1} parent=1 // pred_fallthru
      _
    // Predicated region
    $region6: #{forward.1} parent=1 // pred_check
      _
    $region7: #{forward.1} parent=1 // pred_check_branch
      %25 = sbr.rel (0) target = $region9
    $region8: #{forward.1} parent=1 // pred_region
      _
    $region9: #{forward.1} parent=1 // pred_fallthru
      _
    // Predicated region
    $region10: #{forward.1} parent=1 // pred_check
      _
    $region11: #{forward.1} parent=1 // pred_check_branch
      %27 = sbr.rel (0) target = $region13
    $region12: #{forward.1} parent=1 // pred_region
      _
    $region13: #{forward.1} parent=1 // pred_fallthru
      _
    // Predicated region
    $region14: #{forward.1} parent=1 // pred_check
      _
    $region15: #{forward.1} parent=1 // pred_check_branch
      %29 = sbr.rel (0) target = $region17
    $region16: #{forward.1} parent=1 // pred_region
      _
    $region17: #{forward.1} parent=1 // pred_fallthru
      _
    // Predicated region
    $region18: #{forward.1} parent=1 // pred_check
      _
    $region19: #{forward.1} parent=1 // pred_check_branch
      %31 = sbr.rel (0) target = $region21
    $region20: #{forward.1} parent=1 // pred_region
      _
    $region21: #{forward.1} parent=1 // pred_fallthru
      _
    // Predicated region
    $region22: #{forward.1} parent=1 // pred_check
      _
    $region23: #{forward.1} parent=1 // pred_check_branch
      %33 = sbr.rel (0) target = $region25
    $region24: #{forward.1} parent=1 // pred_region
      _
    $region25: #{forward.1} parent=1 // pred_fallthru
      _
    // Predicated region
    $region26: #{forward.1} parent=1 // pred_check
      _
    $region27: #{forward.1} parent=1 // pred_check_branch
      %35 = sbr.rel (0) target = $region29
    $region28: #{forward.1} parent=1 // pred_region
      _
    $region29: #{forward.1} parent=1 // pred_fallthru
      _
    // Predicated region
    $region30: #{forward.1} parent=1 // pred_check
      _
    $region31: #{forward.1} parent=1 // pred_check_branch
      %37 = sbr.rel (0) target = $region33
    $region32: #{forward.1} parent=1 // pred_region
      _
    $region33: #{forward.1} parent=1 // pred_fallthru
      _
    // Predicated region
    $region34: #{forward.1} parent=1 // pred_check
      _
    $region35: #{forward.1} parent=1 // pred_check_branch
      %39 = sbr.rel (0) target = $region37
    $region36: #{forward.1} parent=1 // pred_region
      _
    $region37: #{forward.1} parent=1 // pred_fallthru
      _
    // Predicated region
    $region38: #{forward.1} parent=1 // pred_check
      _
    $region39: #{forward.1} parent=1 // pred_check_branch
      %41 = sbr.rel (0) target = $region41
    $region40: #{forward.1} parent=1 // pred_region
      _
    $region41: #{forward.1} parent=1 // pred_fallthru
      _
    // Predicated region
    $region42: #{forward.1} parent=1 // pred_check
      _
    $region43: #{forward.1} parent=1 // pred_check_branch
      %43 = sbr.rel (0) target = $region45
    $region44: #{forward.1} parent=1 // pred_region
      _
    $region45: #{forward.1} parent=1 // pred_fallthru
      _
    // Predicated region
    $region46: #{forward.1} parent=1 // pred_check
      _
    $region47: #{forward.1} parent=1 // pred_check_branch
      %45 = sbr.rel (0) target = $region49
    $region48: #{forward.1} parent=1 // pred_region
      _
    $region49: #{forward.1} parent=1 // pred_fallthru
      _
    // Predicated region
    $region50: #{forward.1} parent=1 // pred_check
      _
    $region51: #{forward.1} parent=1 // pred_check_branch
      %47 = sbr.rel (0) target = $region53
    $region52: #{forward.1} parent=1 // pred_region
      _
    $region53: #{forward.1} parent=1 // pred_fallthru
      _
    // Predicated region
    $region54: #{forward.1} parent=1 // pred_check
      _
    $region55: #{forward.1} parent=1 // pred_check_branch
      %49 = sbr.rel (0) target = $region57
    $region56: #{forward.1} parent=1 // pred_region
      %s51 = ssub.s32 512, 512
      %52 = vsyncadd [#allocation4], %s51
      %s53 = sshll.u32 [#allocation3], 4
      %s54 = int_to_ptr.vmem [resolvable:$true] %s53
      %59 = dma.hbm_to_vmem [thread:$0]  %s13, 512, %s54, [#allocation4], 128, 128, 8
    $region57: #{forward.1} parent=1 // pred_fallthru
      _
    // Predicated region
    $region58: #{forward.1} parent=1 // pred_check
      _
    $region59: #{forward.1} parent=1 // pred_check_branch
      %61 = sbr.rel (0) target = $region61
    $region60: #{forward.1} parent=1 // pred_region
      _
    $region61: #{forward.1} parent=1 // pred_fallthru
      _
    // Predicated region
    $region62: #{forward.1} parent=1 // pred_check
      _
    $region63: #{forward.1} parent=1 // pred_check_branch
      %63 = sbr.rel (0) target = $region65
    $region64: #{forward.1} parent=1 // pred_region
      _
    $region65: #{forward.1} parent=1 // pred_fallthru
      _
    // Predicated region
    $region66: #{forward.1} parent=1 // pred_check
      _
    $region67: #{forward.1} parent=1 // pred_check_branch
      %65 = sbr.rel (0) target = $region69
    $region68: #{forward.1} parent=1 // pred_region
      %66 = dma.done [#allocation4], 512
    $region69: #{forward.1} parent=1 // pred_fallthru
      _
    %v67 = vld [vmem:[%s3] sm:$0xff]
    %v68 = vld [vmem:[%s3 + $0x8] sm:$0xff]
    %v69 = vld [vmem:[%s3 + $0x10] sm:$0xff]
    %v70 = vld [vmem:[%s3 + $0x18] sm:$0xff]
    %v71 = vld [vmem:[%s1] sm:$0xff]
    %v72 = vld [vmem:[%s0] sm:$0xff]
    %v73 = vld [vmem:[%s0 + $0x8] sm:$0xff]
    %v74 = vld [vmem:[%s0 + $0x10] sm:$0xff]
    %v75 = vld [vmem:[%s0 + $0x18] sm:$0xff]
    %v76 = vld [vmem:[%s0 + $0x20] sm:$0xff]
    %v77 = vld [vmem:[%s0 + $0x28] sm:$0xff]
    %v78 = vld [vmem:[%s0 + $0x30] sm:$0xff]
    %v79 = vld [vmem:[%s0 + $0x38] sm:$0xff]
    %v80 = vld [vmem:[%s2] sm:$0xff]
    %v81 = vld [vmem:[%s2 + $0x8] sm:$0xff]
    %v82 = vld [vmem:[%s2 + $0x10] sm:$0xff]
    %v83 = vld [vmem:[%s2 + $0x18] sm:$0xff]
    %v84 = vld [vmem:[%s4] sm:$0x1]
    %v86 = vlaneseq
    %v87 = vshrl.u32 %v86, 7
    %v88 = vsub.s32 0, %v87
    %v89 = vrot.slane %v84, %v88
    %vm91 = vcmask 261120
    %v93 = vsel %vm91, %v72, 0
    %v96 = vsel %vm91, %v73, 0
    %v99 = vsel %vm91, %v74, 0
    %v102 = vsel %vm91, %v75, 0
    %v105 = vsel %vm91, %v76, 0
    %v108 = vsel %vm91, %v77, 0
    %v111 = vsel %vm91, %v78, 0
    %v114 = vsel %vm91, %v79, 0
    %116 = vmatprep.subr.mxu0 0.0
    %117 = vmatpush1.msra.mxu0 %v80
    %118 = vmatprep.subr.mxu0 0.0
    %119 = vmatpush1.msra.mxu0 %v81
    %120 = vmatprep.subr.mxu0 0.0
    %121 = vmatpush1.msra.mxu0 %v82
    %122 = vmatprep.subr.mxu0 0.0
    %123 = vmatpush1.msra.mxu0 %v83
    %124 = vmatprep.subr.mxu0 0.0
    %125 = vmatpush1.msra.mxu0 0.0
    %126 = vmatprep.subr.mxu0 0.0
    %127 = vmatpush1.msra.mxu0 0.0
    %128 = vmatprep.subr.mxu0 0.0
    %129 = vmatpush1.msra.mxu0 0.0
    %130 = vmatprep.subr.mxu0 0.0
    %131 = vmatpush1.msra.mxu0 0.0
    %132 = vmatprep.subr.mxu0 0.0
    %133 = vmatpush1.msra.mxu0 0.0
    %134 = vmatprep.subr.mxu0 0.0
    %135 = vmatpush1.msra.mxu0 0.0
    %136 = vmatprep.subr.mxu0 0.0
    %137 = vmatpush1.msra.mxu0 0.0
    %138 = vmatprep.subr.mxu0 0.0
    %139 = vmatpush1.msra.mxu0 0.0
    %140 = vmatprep.subr.mxu0 0.0
    %141 = vmatpush1.msra.mxu0 0.0
    %142 = vmatprep.subr.mxu0 0.0
    %143 = vmatpush1.msra.mxu0 0.0
    %144 = vmatprep.subr.mxu0 0.0
    %145 = vmatpush1.msra.mxu0 0.0
    %146 = vmatprep.subr.mxu0 0.0
    %147 = vmatpush1.msra.mxu0 0.0
    %148 = vmatprep.subr.mxu0 0.0
    %149 = vmatpush1.msra.mxu0 0.0
    %150 = vmatprep.subr.mxu0 0.0
    %151 = vmatpush1.msra.mxu0 0.0
    %152 = vmatprep.subr.mxu0 0.0
    %153 = vmatpush1.msra.mxu0 0.0
    %154 = vmatprep.subr.mxu0 0.0
    %155 = vmatpush1.msra.mxu0 0.0
    %156 = vmatprep.subr.mxu0 0.0
    %157 = vmatpush1.msra.mxu0 0.0
    %158 = vmatprep.subr.mxu0 0.0
    %159 = vmatpush1.msra.mxu0 0.0
    %160 = vmatprep.subr.mxu0 0.0
    %161 = vmatpush1.msra.mxu0 0.0
    %162 = vmatprep.subr.mxu0 0.0
    %163 = vmatpush1.msra.mxu0 0.0
    %164 = vmatprep.subr.mxu0 0.0
    %165 = vmatpush1.msra.mxu0 0.0
    %166 = vmatprep.subr.mxu0 0.0
    %167 = vmatpush1.msra.mxu0 0.0
    %168 = vmatprep.subr.mxu0 0.0
    %169 = vmatpush1.msra.mxu0 0.0
    %170 = vmatprep.subr.mxu0 0.0
    %171 = vmatpush1.msra.mxu0 0.0
    %172 = vmatprep.subr.mxu0 0.0
    %173 = vmatpush1.msra.mxu0 0.0
    %174 = vmatprep.subr.mxu0 0.0
    %175 = vmatpush1.msra.mxu0 0.0
    %176 = vmatprep.subr.mxu0 0.0
    %177 = vmatpush1.msra.mxu0 0.0
    %178 = vmatprep.subr.mxu0 0.0
    %179 = vmatpush1.msra.mxu0 0.0
    %180 = vmatprep.mubr.f32.mxu0 0.0
    %181 = vmatmul.mubr.f32.gmra.mrb[0].mxu0 %v93
    %v182 = vpop.f32.mrb[0].mxu0
    %v183 = vadd.f32 %v89, %v182
    %v184 = vpop.f32.mrb[0].mxu0
    %185 = vmatprep.mubr.f32.mxu0 0.0
    %186 = vmatmul.mubr.f32.gmra.mrb[0].mxu0 %v96
    %v187 = vpop.f32.mrb[0].mxu0
    %v188 = vadd.f32 %v89, %v187
    %v189 = vpop.f32.mrb[0].mxu0
    %190 = vmatprep.mubr.f32.mxu0 0.0
    %191 = vmatmul.mubr.f32.gmra.mrb[0].mxu0 %v99
    %v192 = vpop.f32.mrb[0].mxu0
    %v193 = vadd.f32 %v89, %v192
    %v194 = vpop.f32.mrb[0].mxu0
    %195 = vmatprep.mubr.f32.mxu0 0.0
    %196 = vmatmul.mubr.f32.gmra.mrb[0].mxu0 %v102
    %v197 = vpop.f32.mrb[0].mxu0
    %v198 = vadd.f32 %v89, %v197
    %v199 = vpop.f32.mrb[0].mxu0
    %200 = vmatprep.mubr.f32.mxu0 0.0
    %201 = vmatmul.mubr.f32.gmra.mrb[0].mxu0 %v105
    %v202 = vpop.f32.mrb[0].mxu0
    %v203 = vadd.f32 %v89, %v202
    %v204 = vpop.f32.mrb[0].mxu0
    %205 = vmatprep.mubr.f32.mxu0 0.0
    %206 = vmatmul.mubr.f32.gmra.mrb[0].mxu0 %v108
    %v207 = vpop.f32.mrb[0].mxu0
    %v208 = vadd.f32 %v89, %v207
    %v209 = vpop.f32.mrb[0].mxu0
    %210 = vmatprep.mubr.f32.mxu0 0.0
    %211 = vmatmul.mubr.f32.gmra.mrb[0].mxu0 %v111
    %v212 = vpop.f32.mrb[0].mxu0
    %v213 = vadd.f32 %v89, %v212
    %v214 = vpop.f32.mrb[0].mxu0
    %215 = vmatprep.mubr.f32.mxu0 0.0
    %216 = vmatmul.mubr.f32.gmra.mrb[0].mxu0 %v114
    %v217 = vpop.f32.mrb[0].mxu0
    %v218 = vadd.f32 %v89, %v217
    %v219 = vpop.f32.mrb[0].mxu0
    %220 = vdwg.mxu0
    %221 = vst [vmem:[#allocation2] sm:$0xff] %v183
    %222 = vst [vmem:[#allocation2 + $0x8] sm:$0xff] %v188
    %223 = vst [vmem:[#allocation2 + $0x10] sm:$0xff] %v193
    %224 = vst [vmem:[#allocation2 + $0x18] sm:$0xff] %v198
    %225 = vst [vmem:[#allocation2 + $0x20] sm:$0xff] %v203
    %226 = vst [vmem:[#allocation2 + $0x28] sm:$0xff] %v208
    %227 = vst [vmem:[#allocation2 + $0x30] sm:$0xff] %v213
    %228 = vst [vmem:[#allocation2 + $0x38] sm:$0xff] %v218
    %v229 = vld [vmem:[#allocation2] sm:$0xff]
    %v231 = vsel %vm91, 0.0, 0
    %233 = vmatprep.subr.mxu0 0.0
    %234 = vmatpush1.msra.mxu0 %v67
    %235 = vmatprep.subr.mxu0 0.0
    %236 = vmatpush1.msra.mxu0 %v68
    %237 = vmatprep.subr.mxu0 0.0
    %238 = vmatpush1.msra.mxu0 %v69
    %239 = vmatprep.subr.mxu0 0.0
    %240 = vmatpush1.msra.mxu0 %v70
    %241 = vmatprep.subr.mxu0 0.0
    %242 = vmatpush1.msra.mxu0 0.0
    %243 = vmatprep.subr.mxu0 0.0
    %244 = vmatpush1.msra.mxu0 0.0
    %245 = vmatprep.subr.mxu0 0.0
    %246 = vmatpush1.msra.mxu0 0.0
    %247 = vmatprep.subr.mxu0 0.0
    %248 = vmatpush1.msra.mxu0 0.0
    %249 = vmatprep.subr.mxu0 0.0
    %250 = vmatpush1.msra.mxu0 0.0
    %251 = vmatprep.subr.mxu0 0.0
    %252 = vmatpush1.msra.mxu0 0.0
    %253 = vmatprep.subr.mxu0 0.0
    %254 = vmatpush1.msra.mxu0 0.0
    %255 = vmatprep.subr.mxu0 0.0
    %256 = vmatpush1.msra.mxu0 0.0
    %257 = vmatprep.subr.mxu0 0.0
    %258 = vmatpush1.msra.mxu0 0.0
    %259 = vmatprep.subr.mxu0 0.0
    %260 = vmatpush1.msra.mxu0 0.0
    %261 = vmatprep.subr.mxu0 0.0
    %262 = vmatpush1.msra.mxu0 0.0
    %263 = vmatprep.subr.mxu0 0.0
    %264 = vmatpush1.msra.mxu0 0.0
    %265 = vmatprep.subr.mxu0 0.0
    %266 = vmatpush1.msra.mxu0 0.0
    %267 = vmatprep.subr.mxu0 0.0
    %268 = vmatpush1.msra.mxu0 0.0
    %269 = vmatprep.subr.mxu0 0.0
    %270 = vmatpush1.msra.mxu0 0.0
    %271 = vmatprep.subr.mxu0 0.0
    %272 = vmatpush1.msra.mxu0 0.0
    %273 = vmatprep.subr.mxu0 0.0
    %274 = vmatpush1.msra.mxu0 0.0
    %275 = vmatprep.subr.mxu0 0.0
    %276 = vmatpush1.msra.mxu0 0.0
    %277 = vmatprep.subr.mxu0 0.0
    %278 = vmatpush1.msra.mxu0 0.0
    %279 = vmatprep.subr.mxu0 0.0
    %280 = vmatpush1.msra.mxu0 0.0
    %281 = vmatprep.subr.mxu0 0.0
    %282 = vmatpush1.msra.mxu0 0.0
    %283 = vmatprep.subr.mxu0 0.0
    %284 = vmatpush1.msra.mxu0 0.0
    %285 = vmatprep.subr.mxu0 0.0
    %286 = vmatpush1.msra.mxu0 0.0
    %287 = vmatprep.subr.mxu0 0.0
    %288 = vmatpush1.msra.mxu0 0.0
    %289 = vmatprep.subr.mxu0 0.0
    %290 = vmatpush1.msra.mxu0 0.0
    %291 = vmatprep.subr.mxu0 0.0
    %292 = vmatpush1.msra.mxu0 0.0
    %293 = vmatprep.subr.mxu0 0.0
    %294 = vmatpush1.msra.mxu0 0.0
    %295 = vmatprep.subr.mxu0 0.0
    %296 = vmatpush1.msra.mxu0 0.0
    %297 = vmatprep.mubr.f32.mxu0 0.0
    %298 = vmatmul.mubr.f32.gmra.mrb[0].mxu0 %v231
    %v299 = vpop.f32.mrb[0].mxu0
    %v300 = vadd.f32 0.0, %v299
    %v301 = vpop.f32.mrb[0].mxu0
    %302 = vdwg.mxu0
    %v303 = vadd.f32 %v229, %v300
    %v304 = vxor.u32 %v303, 2147483648
    %v305 = vmul.f32 %v304, 1.442695
    %v306 = vpow.pop %v305
    %v307 = vadd.f32 %v306, 1.0
    %v308 = vrcp.pop %v307
    %v309 = vmul.f32 1.0, %v308
    %v310 = vtanh.pop %v303
    %v311 = vmul.f32 %v309, 0.0
    %313 = vrot.lane.b32.xlu0 %v310, 64
    %v314 = vpop.permute.xlu0 %313
    %v316 = vmul.f32 %v309, %v314
    %318 = vrot.lane.b32.xlu0 %v316, 32
    %v319 = vpop.permute.xlu0 %318
    %v321 = vadd.f32 %v311, %v319
    %v322 = vtanh.pop %v321
    %324 = vrot.lane.b32.xlu0 %v322, 64
    %v325 = vpop.permute.xlu0 %324
    %v327 = vmul.f32 %v309, %v325
    %vm328 = vcmp.gt.s32.totalorder %v71, 0
    %v329 = vsel %vm328, 1, 0
    %330 = vset.pattern.permute.xlu0 0
    %331 = vperm.xlu0 %330, %v329
    %v332 = vpop.permute.xlu0 %331
    %vm333 = vcmp.eq.s32.totalorder %v332, 1
    %v334 = vsel %vm333, %v327, 0.0
    %v335 = vsel %vm333, %v321, 0.0
    %s336 = scalar_lea.vmem [#allocation2], 8
    %v337 = vld [vmem:[%s336] sm:$0xff]
    %339 = vrot.lane.b32.xlu0 %v334, 32
    %v340 = vpop.permute.xlu0 %339
    %v341 = vsel %vm91, %v340, 0
    %343 = vmatprep.subr.mxu0 0.0
    %344 = vmatpush1.msra.mxu0 %v67
    %345 = vmatprep.subr.mxu0 0.0
    %346 = vmatpush1.msra.mxu0 %v68
    %347 = vmatprep.subr.mxu0 0.0
    %348 = vmatpush1.msra.mxu0 %v69
    %349 = vmatprep.subr.mxu0 0.0
    %350 = vmatpush1.msra.mxu0 %v70
    %351 = vmatprep.subr.mxu0 0.0
    %352 = vmatpush1.msra.mxu0 0.0
    %353 = vmatprep.subr.mxu0 0.0
    %354 = vmatpush1.msra.mxu0 0.0
    %355 = vmatprep.subr.mxu0 0.0
    %356 = vmatpush1.msra.mxu0 0.0
    %357 = vmatprep.subr.mxu0 0.0
    %358 = vmatpush1.msra.mxu0 0.0
    %359 = vmatprep.subr.mxu0 0.0
    %360 = vmatpush1.msra.mxu0 0.0
    %361 = vmatprep.subr.mxu0 0.0
    %362 = vmatpush1.msra.mxu0 0.0
    %363 = vmatprep.subr.mxu0 0.0
    %364 = vmatpush1.msra.mxu0 0.0
    %365 = vmatprep.subr.mxu0 0.0
    %366 = vmatpush1.msra.mxu0 0.0
    %367 = vmatprep.subr.mxu0 0.0
    %368 = vmatpush1.msra.mxu0 0.0
    %369 = vmatprep.subr.mxu0 0.0
    %370 = vmatpush1.msra.mxu0 0.0
    %371 = vmatprep.subr.mxu0 0.0
    %372 = vmatpush1.msra.mxu0 0.0
    %373 = vmatprep.subr.mxu0 0.0
    %374 = vmatpush1.msra.mxu0 0.0
    %375 = vmatprep.subr.mxu0 0.0
    %376 = vmatpush1.msra.mxu0 0.0
    %377 = vmatprep.subr.mxu0 0.0
    %378 = vmatpush1.msra.mxu0 0.0
    %379 = vmatprep.subr.mxu0 0.0
    %380 = vmatpush1.msra.mxu0 0.0
    %381 = vmatprep.subr.mxu0 0.0
    %382 = vmatpush1.msra.mxu0 0.0
    %383 = vmatprep.subr.mxu0 0.0
    %384 = vmatpush1.msra.mxu0 0.0
    %385 = vmatprep.subr.mxu0 0.0
    %386 = vmatpush1.msra.mxu0 0.0
    %387 = vmatprep.subr.mxu0 0.0
    %388 = vmatpush1.msra.mxu0 0.0
    %389 = vmatprep.subr.mxu0 0.0
    %390 = vmatpush1.msra.mxu0 0.0
    %391 = vmatprep.subr.mxu0 0.0
    %392 = vmatpush1.msra.mxu0 0.0
    %393 = vmatprep.subr.mxu0 0.0
    %394 = vmatpush1.msra.mxu0 0.0
    %395 = vmatprep.subr.mxu0 0.0
    %396 = vmatpush1.msra.mxu0 0.0
    %397 = vmatprep.subr.mxu0 0.0
    %398 = vmatpush1.msra.mxu0 0.0
    %399 = vmatprep.subr.mxu0 0.0
    %400 = vmatpush1.msra.mxu0 0.0
    %401 = vmatprep.subr.mxu0 0.0
    %402 = vmatpush1.msra.mxu0 0.0
    %403 = vmatprep.subr.mxu0 0.0
    %404 = vmatpush1.msra.mxu0 0.0
    %405 = vmatprep.subr.mxu0 0.0
    %406 = vmatpush1.msra.mxu0 0.0
    %407 = vmatprep.mubr.f32.mxu0 0.0
    %408 = vmatmul.mubr.f32.gmra.mrb[0].mxu0 %v341
    %v409 = vpop.f32.mrb[0].mxu0
    %v410 = vadd.f32 0.0, %v409
    %v411 = vpop.f32.mrb[0].mxu0
    %412 = vdwg.mxu0
    %v413 = vadd.f32 %v337, %v410
    %v414 = vxor.u32 %v413, 2147483648
    %v415 = vmul.f32 %v414, 1.442695
    %v416 = vpow.pop %v415
    %v417 = vadd.f32 %v416, 1.0
    %v418 = vrcp.pop %v417
    %v419 = vmul.f32 1.0, %v418
    %v420 = vtanh.pop %v413
    %v421 = vmul.f32 %v419, %v335
    %423 = vrot.lane.b32.xlu0 %v420, 64
    %v424 = vpop.permute.xlu0 %423
    %v426 = vmul.f32 %v419, %v424
    %428 = vrot.lane.b32.xlu0 %v426, 32
    %v429 = vpop.permute.xlu0 %428
    %v431 = vadd.f32 %v421, %v429
    %v432 = vtanh.pop %v431
    %434 = vrot.lane.b32.xlu0 %v432, 64
    %v435 = vpop.permute.xlu0 %434
    %v437 = vmul.f32 %v419, %v435
    %vm438 = vcmp.gt.s32.totalorder %v71, 1
    %v439 = vsel %vm438, 1, 0
    %440 = vset.pattern.permute.xlu0 0
    %441 = vperm.xlu0 %440, %v439
    %v442 = vpop.permute.xlu0 %441
    %vm443 = vcmp.eq.s32.totalorder %v442, 1
    %v444 = vsel %vm443, %v437, %v334
    %v445 = vsel %vm443, %v431, %v335
    %s446 = scalar_lea.vmem [#allocation2], 16
    %v447 = vld [vmem:[%s446] sm:$0xff]
    %449 = vrot.lane.b32.xlu0 %v444, 32
    %v450 = vpop.permute.xlu0 %449
    %v451 = vsel %vm91, %v450, 0
    %453 = vmatprep.subr.mxu0 0.0
    %454 = vmatpush1.msra.mxu0 %v67
    %455 = vmatprep.subr.mxu0 0.0
    %456 = vmatpush1.msra.mxu0 %v68
    %457 = vmatprep.subr.mxu0 0.0
    %458 = vmatpush1.msra.mxu0 %v69
    %459 = vmatprep.subr.mxu0 0.0
    %460 = vmatpush1.msra.mxu0 %v70
    %461 = vmatprep.subr.mxu0 0.0
    %462 = vmatpush1.msra.mxu0 0.0
    %463 = vmatprep.subr.mxu0 0.0
    %464 = vmatpush1.msra.mxu0 0.0
    %465 = vmatprep.subr.mxu0 0.0
    %466 = vmatpush1.msra.mxu0 0.0
    %467 = vmatprep.subr.mxu0 0.0
    %468 = vmatpush1.msra.mxu0 0.0
    %469 = vmatprep.subr.mxu0 0.0
    %470 = vmatpush1.msra.mxu0 0.0
    %471 = vmatprep.subr.mxu0 0.0
    %472 = vmatpush1.msra.mxu0 0.0
    %473 = vmatprep.subr.mxu0 0.0
    %474 = vmatpush1.msra.mxu0 0.0
    %475 = vmatprep.subr.mxu0 0.0
    %476 = vmatpush1.msra.mxu0 0.0
    %477 = vmatprep.subr.mxu0 0.0
    %478 = vmatpush1.msra.mxu0 0.0
    %479 = vmatprep.subr.mxu0 0.0
    %480 = vmatpush1.msra.mxu0 0.0
    %481 = vmatprep.subr.mxu0 0.0
    %482 = vmatpush1.msra.mxu0 0.0
    %483 = vmatprep.subr.mxu0 0.0
    %484 = vmatpush1.msra.mxu0 0.0
    %485 = vmatprep.subr.mxu0 0.0
    %486 = vmatpush1.msra.mxu0 0.0
    %487 = vmatprep.subr.mxu0 0.0
    %488 = vmatpush1.msra.mxu0 0.0
    %489 = vmatprep.subr.mxu0 0.0
    %490 = vmatpush1.msra.mxu0 0.0
    %491 = vmatprep.subr.mxu0 0.0
    %492 = vmatpush1.msra.mxu0 0.0
    %493 = vmatprep.subr.mxu0 0.0
    %494 = vmatpush1.msra.mxu0 0.0
    %495 = vmatprep.subr.mxu0 0.0
    %496 = vmatpush1.msra.mxu0 0.0
    %497 = vmatprep.subr.mxu0 0.0
    %498 = vmatpush1.msra.mxu0 0.0
    %499 = vmatprep.subr.mxu0 0.0
    %500 = vmatpush1.msra.mxu0 0.0
    %501 = vmatprep.subr.mxu0 0.0
    %502 = vmatpush1.msra.mxu0 0.0
    %503 = vmatprep.subr.mxu0 0.0
    %504 = vmatpush1.msra.mxu0 0.0
    %505 = vmatprep.subr.mxu0 0.0
    %506 = vmatpush1.msra.mxu0 0.0
    %507 = vmatprep.subr.mxu0 0.0
    %508 = vmatpush1.msra.mxu0 0.0
    %509 = vmatprep.subr.mxu0 0.0
    %510 = vmatpush1.msra.mxu0 0.0
    %511 = vmatprep.subr.mxu0 0.0
    %512 = vmatpush1.msra.mxu0 0.0
    %513 = vmatprep.subr.mxu0 0.0
    %514 = vmatpush1.msra.mxu0 0.0
    %515 = vmatprep.subr.mxu0 0.0
    %516 = vmatpush1.msra.mxu0 0.0
    %517 = vmatprep.mubr.f32.mxu0 0.0
    %518 = vmatmul.mubr.f32.gmra.mrb[0].mxu0 %v451
    %v519 = vpop.f32.mrb[0].mxu0
    %v520 = vadd.f32 0.0, %v519
    %v521 = vpop.f32.mrb[0].mxu0
    %522 = vdwg.mxu0
    %v523 = vadd.f32 %v447, %v520
    %v524 = vxor.u32 %v523, 2147483648
    %v525 = vmul.f32 %v524, 1.442695
    %v526 = vpow.pop %v525
    %v527 = vadd.f32 %v526, 1.0
    %v528 = vrcp.pop %v527
    %v529 = vmul.f32 1.0, %v528
    %v530 = vtanh.pop %v523
    %v531 = vmul.f32 %v529, %v445
    %533 = vrot.lane.b32.xlu0 %v530, 64
    %v534 = vpop.permute.xlu0 %533
    %v536 = vmul.f32 %v529, %v534
    %538 = vrot.lane.b32.xlu0 %v536, 32
    %v539 = vpop.permute.xlu0 %538
    %v541 = vadd.f32 %v531, %v539
    %v542 = vtanh.pop %v541
    %544 = vrot.lane.b32.xlu0 %v542, 64
    %v545 = vpop.permute.xlu0 %544
    %v547 = vmul.f32 %v529, %v545
    %vm548 = vcmp.gt.s32.totalorder %v71, 2
    %v549 = vsel %vm548, 1, 0
    %550 = vset.pattern.permute.xlu0 0
    %551 = vperm.xlu0 %550, %v549
    %v552 = vpop.permute.xlu0 %551
    %vm553 = vcmp.eq.s32.totalorder %v552, 1
    %v554 = vsel %vm553, %v547, %v444
    %v555 = vsel %vm553, %v541, %v445
    %s556 = scalar_lea.vmem [#allocation2], 24
    %v557 = vld [vmem:[%s556] sm:$0xff]
    %559 = vrot.lane.b32.xlu0 %v554, 32
    %v560 = vpop.permute.xlu0 %559
    %v561 = vsel %vm91, %v560, 0
    %563 = vmatprep.subr.mxu0 0.0
    %564 = vmatpush1.msra.mxu0 %v67
    %565 = vmatprep.subr.mxu0 0.0
    %566 = vmatpush1.msra.mxu0 %v68
    %567 = vmatprep.subr.mxu0 0.0
    %568 = vmatpush1.msra.mxu0 %v69
    %569 = vmatprep.subr.mxu0 0.0
    %570 = vmatpush1.msra.mxu0 %v70
    %571 = vmatprep.subr.mxu0 0.0
    %572 = vmatpush1.msra.mxu0 0.0
    %573 = vmatprep.subr.mxu0 0.0
    %574 = vmatpush1.msra.mxu0 0.0
    %575 = vmatprep.subr.mxu0 0.0
    %576 = vmatpush1.msra.mxu0 0.0
    %577 = vmatprep.subr.mxu0 0.0
    %578 = vmatpush1.msra.mxu0 0.0
    %579 = vmatprep.subr.mxu0 0.0
    %580 = vmatpush1.msra.mxu0 0.0
    %581 = vmatprep.subr.mxu0 0.0
    %582 = vmatpush1.msra.mxu0 0.0
    %583 = vmatprep.subr.mxu0 0.0
    %584 = vmatpush1.msra.mxu0 0.0
    %585 = vmatprep.subr.mxu0 0.0
    %586 = vmatpush1.msra.mxu0 0.0
    %587 = vmatprep.subr.mxu0 0.0
    %588 = vmatpush1.msra.mxu0 0.0
    %589 = vmatprep.subr.mxu0 0.0
    %590 = vmatpush1.msra.mxu0 0.0
    %591 = vmatprep.subr.mxu0 0.0
    %592 = vmatpush1.msra.mxu0 0.0
    %593 = vmatprep.subr.mxu0 0.0
    %594 = vmatpush1.msra.mxu0 0.0
    %595 = vmatprep.subr.mxu0 0.0
    %596 = vmatpush1.msra.mxu0 0.0
    %597 = vmatprep.subr.mxu0 0.0
    %598 = vmatpush1.msra.mxu0 0.0
    %599 = vmatprep.subr.mxu0 0.0
    %600 = vmatpush1.msra.mxu0 0.0
    %601 = vmatprep.subr.mxu0 0.0
    %602 = vmatpush1.msra.mxu0 0.0
    %603 = vmatprep.subr.mxu0 0.0
    %604 = vmatpush1.msra.mxu0 0.0
    %605 = vmatprep.subr.mxu0 0.0
    %606 = vmatpush1.msra.mxu0 0.0
    %607 = vmatprep.subr.mxu0 0.0
    %608 = vmatpush1.msra.mxu0 0.0
    %609 = vmatprep.subr.mxu0 0.0
    %610 = vmatpush1.msra.mxu0 0.0
    %611 = vmatprep.subr.mxu0 0.0
    %612 = vmatpush1.msra.mxu0 0.0
    %613 = vmatprep.subr.mxu0 0.0
    %614 = vmatpush1.msra.mxu0 0.0
    %615 = vmatprep.subr.mxu0 0.0
    %616 = vmatpush1.msra.mxu0 0.0
    %617 = vmatprep.subr.mxu0 0.0
    %618 = vmatpush1.msra.mxu0 0.0
    %619 = vmatprep.subr.mxu0 0.0
    %620 = vmatpush1.msra.mxu0 0.0
    %621 = vmatprep.subr.mxu0 0.0
    %622 = vmatpush1.msra.mxu0 0.0
    %623 = vmatprep.subr.mxu0 0.0
    %624 = vmatpush1.msra.mxu0 0.0
    %625 = vmatprep.subr.mxu0 0.0
    %626 = vmatpush1.msra.mxu0 0.0
    %627 = vmatprep.mubr.f32.mxu0 0.0
    %628 = vmatmul.mubr.f32.gmra.mrb[0].mxu0 %v561
    %v629 = vpop.f32.mrb[0].mxu0
    %v630 = vadd.f32 0.0, %v629
    %v631 = vpop.f32.mrb[0].mxu0
    %632 = vdwg.mxu0
    %v633 = vadd.f32 %v557, %v630
    %v634 = vxor.u32 %v633, 2147483648
    %v635 = vmul.f32 %v634, 1.442695
    %v636 = vpow.pop %v635
    %v637 = vadd.f32 %v636, 1.0
    %v638 = vrcp.pop %v637
    %v639 = vmul.f32 1.0, %v638
    %v640 = vtanh.pop %v633
    %v641 = vmul.f32 %v639, %v555
    %643 = vrot.lane.b32.xlu0 %v640, 64
    %v644 = vpop.permute.xlu0 %643
    %v646 = vmul.f32 %v639, %v644
    %648 = vrot.lane.b32.xlu0 %v646, 32
    %v649 = vpop.permute.xlu0 %648
    %v651 = vadd.f32 %v641, %v649
    %v652 = vtanh.pop %v651
    %654 = vrot.lane.b32.xlu0 %v652, 64
    %v655 = vpop.permute.xlu0 %654
    %v657 = vmul.f32 %v639, %v655
    %vm658 = vcmp.gt.s32.totalorder %v71, 3
    %v659 = vsel %vm658, 1, 0
    %660 = vset.pattern.permute.xlu0 0
    %661 = vperm.xlu0 %660, %v659
    %v662 = vpop.permute.xlu0 %661
    %vm663 = vcmp.eq.s32.totalorder %v662, 1
    %v664 = vsel %vm663, %v657, %v554
    %v665 = vsel %vm663, %v651, %v555
    %s666 = scalar_lea.vmem [#allocation2], 32
    %v667 = vld [vmem:[%s666] sm:$0xff]
    %669 = vrot.lane.b32.xlu0 %v664, 32
    %v670 = vpop.permute.xlu0 %669
    %v671 = vsel %vm91, %v670, 0
    %673 = vmatprep.subr.mxu0 0.0
    %674 = vmatpush1.msra.mxu0 %v67
    %675 = vmatprep.subr.mxu0 0.0
    %676 = vmatpush1.msra.mxu0 %v68
    %677 = vmatprep.subr.mxu0 0.0
    %678 = vmatpush1.msra.mxu0 %v69
    %679 = vmatprep.subr.mxu0 0.0
    %680 = vmatpush1.msra.mxu0 %v70
    %681 = vmatprep.subr.mxu0 0.0
    %682 = vmatpush1.msra.mxu0 0.0
    %683 = vmatprep.subr.mxu0 0.0
    %684 = vmatpush1.msra.mxu0 0.0
    %685 = vmatprep.subr.mxu0 0.0
    %686 = vmatpush1.msra.mxu0 0.0
    %687 = vmatprep.subr.mxu0 0.0
    %688 = vmatpush1.msra.mxu0 0.0
    %689 = vmatprep.subr.mxu0 0.0
    %690 = vmatpush1.msra.mxu0 0.0
    %691 = vmatprep.subr.mxu0 0.0
    %692 = vmatpush1.msra.mxu0 0.0
    %693 = vmatprep.subr.mxu0 0.0
    %694 = vmatpush1.msra.mxu0 0.0
    %695 = vmatprep.subr.mxu0 0.0
    %696 = vmatpush1.msra.mxu0 0.0
    %697 = vmatprep.subr.mxu0 0.0
    %698 = vmatpush1.msra.mxu0 0.0
    %699 = vmatprep.subr.mxu0 0.0
    %700 = vmatpush1.msra.mxu0 0.0
    %701 = vmatprep.subr.mxu0 0.0
    %702 = vmatpush1.msra.mxu0 0.0
    %703 = vmatprep.subr.mxu0 0.0
    %704 = vmatpush1.msra.mxu0 0.0
    %705 = vmatprep.subr.mxu0 0.0
    %706 = vmatpush1.msra.mxu0 0.0
    %707 = vmatprep.subr.mxu0 0.0
    %708 = vmatpush1.msra.mxu0 0.0
    %709 = vmatprep.subr.mxu0 0.0
    %710 = vmatpush1.msra.mxu0 0.0
    %711 = vmatprep.subr.mxu0 0.0
    %712 = vmatpush1.msra.mxu0 0.0
    %713 = vmatprep.subr.mxu0 0.0
    %714 = vmatpush1.msra.mxu0 0.0
    %715 = vmatprep.subr.mxu0 0.0
    %716 = vmatpush1.msra.mxu0 0.0
    %717 = vmatprep.subr.mxu0 0.0
    %718 = vmatpush1.msra.mxu0 0.0
    %719 = vmatprep.subr.mxu0 0.0
    %720 = vmatpush1.msra.mxu0 0.0
    %721 = vmatprep.subr.mxu0 0.0
    %722 = vmatpush1.msra.mxu0 0.0
    %723 = vmatprep.subr.mxu0 0.0
    %724 = vmatpush1.msra.mxu0 0.0
    %725 = vmatprep.subr.mxu0 0.0
    %726 = vmatpush1.msra.mxu0 0.0
    %727 = vmatprep.subr.mxu0 0.0
    %728 = vmatpush1.msra.mxu0 0.0
    %729 = vmatprep.subr.mxu0 0.0
    %730 = vmatpush1.msra.mxu0 0.0
    %731 = vmatprep.subr.mxu0 0.0
    %732 = vmatpush1.msra.mxu0 0.0
    %733 = vmatprep.subr.mxu0 0.0
    %734 = vmatpush1.msra.mxu0 0.0
    %735 = vmatprep.subr.mxu0 0.0
    %736 = vmatpush1.msra.mxu0 0.0
    %737 = vmatprep.mubr.f32.mxu0 0.0
    %738 = vmatmul.mubr.f32.gmra.mrb[0].mxu0 %v671
    %v739 = vpop.f32.mrb[0].mxu0
    %v740 = vadd.f32 0.0, %v739
    %v741 = vpop.f32.mrb[0].mxu0
    %742 = vdwg.mxu0
    %v743 = vadd.f32 %v667, %v740
    %v744 = vxor.u32 %v743, 2147483648
    %v745 = vmul.f32 %v744, 1.442695
    %v746 = vpow.pop %v745
    %v747 = vadd.f32 %v746, 1.0
    %v748 = vrcp.pop %v747
    %v749 = vmul.f32 1.0, %v748
    %v750 = vtanh.pop %v743
    %v751 = vmul.f32 %v749, %v665
    %753 = vrot.lane.b32.xlu0 %v750, 64
    %v754 = vpop.permute.xlu0 %753
    %v756 = vmul.f32 %v749, %v754
    %758 = vrot.lane.b32.xlu0 %v756, 32
    %v759 = vpop.permute.xlu0 %758
    %v761 = vadd.f32 %v751, %v759
    %v762 = vtanh.pop %v761
    %764 = vrot.lane.b32.xlu0 %v762, 64
    %v765 = vpop.permute.xlu0 %764
    %v767 = vmul.f32 %v749, %v765
    %vm768 = vcmp.gt.s32.totalorder %v71, 4
    %v769 = vsel %vm768, 1, 0
    %770 = vset.pattern.permute.xlu0 0
    %771 = vperm.xlu0 %770, %v769
    %v772 = vpop.permute.xlu0 %771
    %vm773 = vcmp.eq.s32.totalorder %v772, 1
    %v774 = vsel %vm773, %v767, %v664
    %v775 = vsel %vm773, %v761, %v665
    %s776 = scalar_lea.vmem [#allocation2], 40
    %v777 = vld [vmem:[%s776] sm:$0xff]
    %779 = vrot.lane.b32.xlu0 %v774, 32
    %v780 = vpop.permute.xlu0 %779
    %v781 = vsel %vm91, %v780, 0
    %783 = vmatprep.subr.mxu0 0.0
    %784 = vmatpush1.msra.mxu0 %v67
    %785 = vmatprep.subr.mxu0 0.0
    %786 = vmatpush1.msra.mxu0 %v68
    %787 = vmatprep.subr.mxu0 0.0
    %788 = vmatpush1.msra.mxu0 %v69
    %789 = vmatprep.subr.mxu0 0.0
    %790 = vmatpush1.msra.mxu0 %v70
    %791 = vmatprep.subr.mxu0 0.0
    %792 = vmatpush1.msra.mxu0 0.0
    %793 = vmatprep.subr.mxu0 0.0
    %794 = vmatpush1.msra.mxu0 0.0
    %795 = vmatprep.subr.mxu0 0.0
    %796 = vmatpush1.msra.mxu0 0.0
    %797 = vmatprep.subr.mxu0 0.0
    %798 = vmatpush1.msra.mxu0 0.0
    %799 = vmatprep.subr.mxu0 0.0
    %800 = vmatpush1.msra.mxu0 0.0
    %801 = vmatprep.subr.mxu0 0.0
    %802 = vmatpush1.msra.mxu0 0.0
    %803 = vmatprep.subr.mxu0 0.0
    %804 = vmatpush1.msra.mxu0 0.0
    %805 = vmatprep.subr.mxu0 0.0
    %806 = vmatpush1.msra.mxu0 0.0
    %807 = vmatprep.subr.mxu0 0.0
    %808 = vmatpush1.msra.mxu0 0.0
    %809 = vmatprep.subr.mxu0 0.0
    %810 = vmatpush1.msra.mxu0 0.0
    %811 = vmatprep.subr.mxu0 0.0
    %812 = vmatpush1.msra.mxu0 0.0
    %813 = vmatprep.subr.mxu0 0.0
    %814 = vmatpush1.msra.mxu0 0.0
    %815 = vmatprep.subr.mxu0 0.0
    %816 = vmatpush1.msra.mxu0 0.0
    %817 = vmatprep.subr.mxu0 0.0
    %818 = vmatpush1.msra.mxu0 0.0
    %819 = vmatprep.subr.mxu0 0.0
    %820 = vmatpush1.msra.mxu0 0.0
    %821 = vmatprep.subr.mxu0 0.0
    %822 = vmatpush1.msra.mxu0 0.0
    %823 = vmatprep.subr.mxu0 0.0
    %824 = vmatpush1.msra.mxu0 0.0
    %825 = vmatprep.subr.mxu0 0.0
    %826 = vmatpush1.msra.mxu0 0.0
    %827 = vmatprep.subr.mxu0 0.0
    %828 = vmatpush1.msra.mxu0 0.0
    %829 = vmatprep.subr.mxu0 0.0
    %830 = vmatpush1.msra.mxu0 0.0
    %831 = vmatprep.subr.mxu0 0.0
    %832 = vmatpush1.msra.mxu0 0.0
    %833 = vmatprep.subr.mxu0 0.0
    %834 = vmatpush1.msra.mxu0 0.0
    %835 = vmatprep.subr.mxu0 0.0
    %836 = vmatpush1.msra.mxu0 0.0
    %837 = vmatprep.subr.mxu0 0.0
    %838 = vmatpush1.msra.mxu0 0.0
    %839 = vmatprep.subr.mxu0 0.0
    %840 = vmatpush1.msra.mxu0 0.0
    %841 = vmatprep.subr.mxu0 0.0
    %842 = vmatpush1.msra.mxu0 0.0
    %843 = vmatprep.subr.mxu0 0.0
    %844 = vmatpush1.msra.mxu0 0.0
    %845 = vmatprep.subr.mxu0 0.0
    %846 = vmatpush1.msra.mxu0 0.0
    %847 = vmatprep.mubr.f32.mxu0 0.0
    %848 = vmatmul.mubr.f32.gmra.mrb[0].mxu0 %v781
    %v849 = vpop.f32.mrb[0].mxu0
    %v850 = vadd.f32 0.0, %v849
    %v851 = vpop.f32.mrb[0].mxu0
    %852 = vdwg.mxu0
    %v853 = vadd.f32 %v777, %v850
    %v854 = vxor.u32 %v853, 2147483648
    %v855 = vmul.f32 %v854, 1.442695
    %v856 = vpow.pop %v855
    %v857 = vadd.f32 %v856, 1.0
    %v858 = vrcp.pop %v857
    %v859 = vmul.f32 1.0, %v858
    %v860 = vtanh.pop %v853
    %v861 = vmul.f32 %v859, %v775
    %863 = vrot.lane.b32.xlu0 %v860, 64
    %v864 = vpop.permute.xlu0 %863
    %v866 = vmul.f32 %v859, %v864
    %868 = vrot.lane.b32.xlu0 %v866, 32
    %v869 = vpop.permute.xlu0 %868
    %v871 = vadd.f32 %v861, %v869
    %v872 = vtanh.pop %v871
    %874 = vrot.lane.b32.xlu0 %v872, 64
    %v875 = vpop.permute.xlu0 %874
    %v877 = vmul.f32 %v859, %v875
    %vm878 = vcmp.gt.s32.totalorder %v71, 5
    %v879 = vsel %vm878, 1, 0
    %880 = vset.pattern.permute.xlu0 0
    %881 = vperm.xlu0 %880, %v879
    %v882 = vpop.permute.xlu0 %881
    %vm883 = vcmp.eq.s32.totalorder %v882, 1
    %v884 = vsel %vm883, %v877, %v774
    %v885 = vsel %vm883, %v871, %v775
    %s886 = scalar_lea.vmem [#allocation2], 48
    %v887 = vld [vmem:[%s886] sm:$0xff]
    %889 = vrot.lane.b32.xlu0 %v884, 32
    %v890 = vpop.permute.xlu0 %889
    %v891 = vsel %vm91, %v890, 0
    %893 = vmatprep.subr.mxu0 0.0
    %894 = vmatpush1.msra.mxu0 %v67
    %895 = vmatprep.subr.mxu0 0.0
    %896 = vmatpush1.msra.mxu0 %v68
    %897 = vmatprep.subr.mxu0 0.0
    %898 = vmatpush1.msra.mxu0 %v69
    %899 = vmatprep.subr.mxu0 0.0
    %900 = vmatpush1.msra.mxu0 %v70
    %901 = vmatprep.subr.mxu0 0.0
    %902 = vmatpush1.msra.mxu0 0.0
    %903 = vmatprep.subr.mxu0 0.0
    %904 = vmatpush1.msra.mxu0 0.0
    %905 = vmatprep.subr.mxu0 0.0
    %906 = vmatpush1.msra.mxu0 0.0
    %907 = vmatprep.subr.mxu0 0.0
    %908 = vmatpush1.msra.mxu0 0.0
    %909 = vmatprep.subr.mxu0 0.0
    %910 = vmatpush1.msra.mxu0 0.0
    %911 = vmatprep.subr.mxu0 0.0
    %912 = vmatpush1.msra.mxu0 0.0
    %913 = vmatprep.subr.mxu0 0.0
    %914 = vmatpush1.msra.mxu0 0.0
    %915 = vmatprep.subr.mxu0 0.0
    %916 = vmatpush1.msra.mxu0 0.0
    %917 = vmatprep.subr.mxu0 0.0
    %918 = vmatpush1.msra.mxu0 0.0
    %919 = vmatprep.subr.mxu0 0.0
    %920 = vmatpush1.msra.mxu0 0.0
    %921 = vmatprep.subr.mxu0 0.0
    %922 = vmatpush1.msra.mxu0 0.0
    %923 = vmatprep.subr.mxu0 0.0
    %924 = vmatpush1.msra.mxu0 0.0
    %925 = vmatprep.subr.mxu0 0.0
    %926 = vmatpush1.msra.mxu0 0.0
    %927 = vmatprep.subr.mxu0 0.0
    %928 = vmatpush1.msra.mxu0 0.0
    %929 = vmatprep.subr.mxu0 0.0
    %930 = vmatpush1.msra.mxu0 0.0
    %931 = vmatprep.subr.mxu0 0.0
    %932 = vmatpush1.msra.mxu0 0.0
    %933 = vmatprep.subr.mxu0 0.0
    %934 = vmatpush1.msra.mxu0 0.0
    %935 = vmatprep.subr.mxu0 0.0
    %936 = vmatpush1.msra.mxu0 0.0
    %937 = vmatprep.subr.mxu0 0.0
    %938 = vmatpush1.msra.mxu0 0.0
    %939 = vmatprep.subr.mxu0 0.0
    %940 = vmatpush1.msra.mxu0 0.0
    %941 = vmatprep.subr.mxu0 0.0
    %942 = vmatpush1.msra.mxu0 0.0
    %943 = vmatprep.subr.mxu0 0.0
    %944 = vmatpush1.msra.mxu0 0.0
    %945 = vmatprep.subr.mxu0 0.0
    %946 = vmatpush1.msra.mxu0 0.0
    %947 = vmatprep.subr.mxu0 0.0
    %948 = vmatpush1.msra.mxu0 0.0
    %949 = vmatprep.subr.mxu0 0.0
    %950 = vmatpush1.msra.mxu0 0.0
    %951 = vmatprep.subr.mxu0 0.0
    %952 = vmatpush1.msra.mxu0 0.0
    %953 = vmatprep.subr.mxu0 0.0
    %954 = vmatpush1.msra.mxu0 0.0
    %955 = vmatprep.subr.mxu0 0.0
    %956 = vmatpush1.msra.mxu0 0.0
    %957 = vmatprep.mubr.f32.mxu0 0.0
    %958 = vmatmul.mubr.f32.gmra.mrb[0].mxu0 %v891
    %v959 = vpop.f32.mrb[0].mxu0
    %v960 = vadd.f32 0.0, %v959
    %v961 = vpop.f32.mrb[0].mxu0
    %962 = vdwg.mxu0
    %v963 = vadd.f32 %v887, %v960
    %v964 = vxor.u32 %v963, 2147483648
    %v965 = vmul.f32 %v964, 1.442695
    %v966 = vpow.pop %v965
    %v967 = vadd.f32 %v966, 1.0
    %v968 = vrcp.pop %v967
    %v969 = vmul.f32 1.0, %v968
    %v970 = vtanh.pop %v963
    %v971 = vmul.f32 %v969, %v885
    %973 = vrot.lane.b32.xlu0 %v970, 64
    %v974 = vpop.permute.xlu0 %973
    %v976 = vmul.f32 %v969, %v974
    %978 = vrot.lane.b32.xlu0 %v976, 32
    %v979 = vpop.permute.xlu0 %978
    %v981 = vadd.f32 %v971, %v979
    %v982 = vtanh.pop %v981
    %984 = vrot.lane.b32.xlu0 %v982, 64
    %v985 = vpop.permute.xlu0 %984
    %v987 = vmul.f32 %v969, %v985
    %vm988 = vcmp.gt.s32.totalorder %v71, 6
    %v989 = vsel %vm988, 1, 0
    %990 = vset.pattern.permute.xlu0 0
    %991 = vperm.xlu0 %990, %v989
    %v992 = vpop.permute.xlu0 %991
    %vm993 = vcmp.eq.s32.totalorder %v992, 1
    %v994 = vsel %vm993, %v987, %v884
    %v995 = vsel %vm993, %v981, %v885
    %s996 = scalar_lea.vmem [#allocation2], 56
    %v997 = vld [vmem:[%s996] sm:$0xff]
    %999 = vrot.lane.b32.xlu0 %v994, 32
    %v1000 = vpop.permute.xlu0 %999
    %v1001 = vsel %vm91, %v1000, 0
    %1003 = vmatprep.subr.mxu0 0.0
    %1004 = vmatpush1.msra.mxu0 %v67
    %1005 = vmatprep.subr.mxu0 0.0
    %1006 = vmatpush1.msra.mxu0 %v68
    %1007 = vmatprep.subr.mxu0 0.0
    %1008 = vmatpush1.msra.mxu0 %v69
    %1009 = vmatprep.subr.mxu0 0.0
    %1010 = vmatpush1.msra.mxu0 %v70
    %1011 = vmatprep.subr.mxu0 0.0
    %1012 = vmatpush1.msra.mxu0 0.0
    %1013 = vmatprep.subr.mxu0 0.0
    %1014 = vmatpush1.msra.mxu0 0.0
    %1015 = vmatprep.subr.mxu0 0.0
    %1016 = vmatpush1.msra.mxu0 0.0
    %1017 = vmatprep.subr.mxu0 0.0
    %1018 = vmatpush1.msra.mxu0 0.0
    %1019 = vmatprep.subr.mxu0 0.0
    %1020 = vmatpush1.msra.mxu0 0.0
    %1021 = vmatprep.subr.mxu0 0.0
    %1022 = vmatpush1.msra.mxu0 0.0
    %1023 = vmatprep.subr.mxu0 0.0
    %1024 = vmatpush1.msra.mxu0 0.0
    %1025 = vmatprep.subr.mxu0 0.0
    %1026 = vmatpush1.msra.mxu0 0.0
    %1027 = vmatprep.subr.mxu0 0.0
    %1028 = vmatpush1.msra.mxu0 0.0
    %1029 = vmatprep.subr.mxu0 0.0
    %1030 = vmatpush1.msra.mxu0 0.0
    %1031 = vmatprep.subr.mxu0 0.0
    %1032 = vmatpush1.msra.mxu0 0.0
    %1033 = vmatprep.subr.mxu0 0.0
    %1034 = vmatpush1.msra.mxu0 0.0
    %1035 = vmatprep.subr.mxu0 0.0
    %1036 = vmatpush1.msra.mxu0 0.0
    %1037 = vmatprep.subr.mxu0 0.0
    %1038 = vmatpush1.msra.mxu0 0.0
    %1039 = vmatprep.subr.mxu0 0.0
    %1040 = vmatpush1.msra.mxu0 0.0
    %1041 = vmatprep.subr.mxu0 0.0
    %1042 = vmatpush1.msra.mxu0 0.0
    %1043 = vmatprep.subr.mxu0 0.0
    %1044 = vmatpush1.msra.mxu0 0.0
    %1045 = vmatprep.subr.mxu0 0.0
    %1046 = vmatpush1.msra.mxu0 0.0
    %1047 = vmatprep.subr.mxu0 0.0
    %1048 = vmatpush1.msra.mxu0 0.0
    %1049 = vmatprep.subr.mxu0 0.0
    %1050 = vmatpush1.msra.mxu0 0.0
    %1051 = vmatprep.subr.mxu0 0.0
    %1052 = vmatpush1.msra.mxu0 0.0
    %1053 = vmatprep.subr.mxu0 0.0
    %1054 = vmatpush1.msra.mxu0 0.0
    %1055 = vmatprep.subr.mxu0 0.0
    %1056 = vmatpush1.msra.mxu0 0.0
    %1057 = vmatprep.subr.mxu0 0.0
    %1058 = vmatpush1.msra.mxu0 0.0
    %1059 = vmatprep.subr.mxu0 0.0
    %1060 = vmatpush1.msra.mxu0 0.0
    %1061 = vmatprep.subr.mxu0 0.0
    %1062 = vmatpush1.msra.mxu0 0.0
    %1063 = vmatprep.subr.mxu0 0.0
    %1064 = vmatpush1.msra.mxu0 0.0
    %1065 = vmatprep.subr.mxu0 0.0
    %1066 = vmatpush1.msra.mxu0 0.0
    %1067 = vmatprep.mubr.f32.mxu0 0.0
    %1068 = vmatmul.mubr.f32.gmra.mrb[0].mxu0 %v1001
    %v1069 = vpop.f32.mrb[0].mxu0
    %v1070 = vadd.f32 0.0, %v1069
    %v1071 = vpop.f32.mrb[0].mxu0
    %1072 = vdwg.mxu0
    %v1073 = vadd.f32 %v997, %v1070
    %v1074 = vxor.u32 %v1073, 2147483648
    %v1075 = vmul.f32 %v1074, 1.442695
    %v1076 = vpow.pop %v1075
    %v1077 = vadd.f32 %v1076, 1.0
    %v1078 = vrcp.pop %v1077
    %v1079 = vmul.f32 1.0, %v1078
    %v1080 = vtanh.pop %v1073
    %v1081 = vmul.f32 %v1079, %v995
    %1083 = vrot.lane.b32.xlu0 %v1080, 64
    %v1084 = vpop.permute.xlu0 %1083
    %v1086 = vmul.f32 %v1079, %v1084
    %1088 = vrot.lane.b32.xlu0 %v1086, 32
    %v1089 = vpop.permute.xlu0 %1088
    %v1091 = vadd.f32 %v1081, %v1089
    %v1092 = vtanh.pop %v1091
    %1094 = vrot.lane.b32.xlu0 %v1092, 64
    %v1095 = vpop.permute.xlu0 %1094
    %v1097 = vmul.f32 %v1079, %v1095
    %vm1098 = vcmp.gt.s32.totalorder %v71, 7
    %v1099 = vsel %vm1098, 1, 0
    %1100 = vset.pattern.permute.xlu0 0
    %1101 = vperm.xlu0 %1100, %v1099
    %v1102 = vpop.permute.xlu0 %1101
    %vm1103 = vcmp.eq.s32.totalorder %v1102, 1
    %v1104 = vsel %vm1103, %v1097, %v994
    %v1105 = vld [vmem:[%s5] sm:$0xff]
    %1107 = vrot.lane.b32.xlu0 %v1104, 32
    %v1108 = vpop.permute.xlu0 %1107
    %vm1110 = vcmask 64512
    %v1112 = vsel %vm1110, %v1105, 0
    %1114 = vmatprep.subr.mxu0 0.0
    %1115 = vmatpush1.msra.mxu0 %v1108
    %1116 = vmatprep.subr.mxu0 0.0
    %1117 = vmatpush1.msra.mxu0 0.0
    %1118 = vmatprep.subr.mxu0 0.0
    %1119 = vmatpush1.msra.mxu0 0.0
    %1120 = vmatprep.subr.mxu0 0.0
    %1121 = vmatpush1.msra.mxu0 0.0
    %1122 = vmatprep.subr.mxu0 0.0
    %1123 = vmatpush1.msra.mxu0 0.0
    %1124 = vmatprep.subr.mxu0 0.0
    %1125 = vmatpush1.msra.mxu0 0.0
    %1126 = vmatprep.subr.mxu0 0.0
    %1127 = vmatpush1.msra.mxu0 0.0
    %1128 = vmatprep.subr.mxu0 0.0
    %1129 = vmatpush1.msra.mxu0 0.0
    %1130 = vmatprep.subr.mxu0 0.0
    %1131 = vmatpush1.msra.mxu0 0.0
    %1132 = vmatprep.subr.mxu0 0.0
    %1133 = vmatpush1.msra.mxu0 0.0
    %1134 = vmatprep.subr.mxu0 0.0
    %1135 = vmatpush1.msra.mxu0 0.0
    %1136 = vmatprep.subr.mxu0 0.0
    %1137 = vmatpush1.msra.mxu0 0.0
    %1138 = vmatprep.subr.mxu0 0.0
    %1139 = vmatpush1.msra.mxu0 0.0
    %1140 = vmatprep.subr.mxu0 0.0
    %1141 = vmatpush1.msra.mxu0 0.0
    %1142 = vmatprep.subr.mxu0 0.0
    %1143 = vmatpush1.msra.mxu0 0.0
    %1144 = vmatprep.subr.mxu0 0.0
    %1145 = vmatpush1.msra.mxu0 0.0
    %1146 = vmatprep.subr.mxu0 0.0
    %1147 = vmatpush1.msra.mxu0 0.0
    %1148 = vmatprep.subr.mxu0 0.0
    %1149 = vmatpush1.msra.mxu0 0.0
    %1150 = vmatprep.subr.mxu0 0.0
    %1151 = vmatpush1.msra.mxu0 0.0
    %1152 = vmatprep.subr.mxu0 0.0
    %1153 = vmatpush1.msra.mxu0 0.0
    %1154 = vmatprep.subr.mxu0 0.0
    %1155 = vmatpush1.msra.mxu0 0.0
    %1156 = vmatprep.subr.mxu0 0.0
    %1157 = vmatpush1.msra.mxu0 0.0
    %1158 = vmatprep.subr.mxu0 0.0
    %1159 = vmatpush1.msra.mxu0 0.0
    %1160 = vmatprep.subr.mxu0 0.0
    %1161 = vmatpush1.msra.mxu0 0.0
    %1162 = vmatprep.subr.mxu0 0.0
    %1163 = vmatpush1.msra.mxu0 0.0
    %1164 = vmatprep.subr.mxu0 0.0
    %1165 = vmatpush1.msra.mxu0 0.0
    %1166 = vmatprep.subr.mxu0 0.0
    %1167 = vmatpush1.msra.mxu0 0.0
    %1168 = vmatprep.subr.mxu0 0.0
    %1169 = vmatpush1.msra.mxu0 0.0
    %1170 = vmatprep.subr.mxu0 0.0
    %1171 = vmatpush1.msra.mxu0 0.0
    %1172 = vmatprep.subr.mxu0 0.0
    %1173 = vmatpush1.msra.mxu0 0.0
    %1174 = vmatprep.subr.mxu0 0.0
    %1175 = vmatpush1.msra.mxu0 0.0
    %1176 = vmatprep.subr.mxu0 0.0
    %1177 = vmatpush1.msra.mxu0 0.0
    %1178 = vmatprep.mubr.f32.mxu0 0.0
    %1179 = vmatmul.mubr.f32.gmra.mrb[0].mxu0 %v1112
    %v1180 = vpop.f32.mrb[0].mxu0
    %v1181 = vadd.f32 0.0, %v1180
    %v1182 = vpop.f32.mrb[0].mxu0
    %1183 = vdwg.mxu0
    %v1184 = vld [vmem:[%s7] sm:$0xff]
    %v1185 = vld [vmem:[%s7 + $0x8] sm:$0xff]
    %v1186 = vld [vmem:[%s7 + $0x10] sm:$0xff]
    %v1187 = vld [vmem:[%s7 + $0x18] sm:$0xff]
    %v1188 = vld [vmem:[%s8] sm:$0x1]
    %v1190 = vlaneseq
    %v1191 = vshrl.u32 %v1190, 7
    %v1192 = vsub.s32 0, %v1191
    %v1193 = vrot.slane %v1188, %v1192
    %v1196 = vsel %vm91, %v1181, 0
    %1198 = vmatprep.subr.mxu0 0.0
    %1199 = vmatpush1.msra.mxu0 %v1184
    %1200 = vmatprep.subr.mxu0 0.0
    %1201 = vmatpush1.msra.mxu0 %v1185
    %1202 = vmatprep.subr.mxu0 0.0
    %1203 = vmatpush1.msra.mxu0 %v1186
    %1204 = vmatprep.subr.mxu0 0.0
    %1205 = vmatpush1.msra.mxu0 %v1187
    %1206 = vmatprep.subr.mxu0 0.0
    %1207 = vmatpush1.msra.mxu0 0.0
    %1208 = vmatprep.subr.mxu0 0.0
    %1209 = vmatpush1.msra.mxu0 0.0
    %1210 = vmatprep.subr.mxu0 0.0
    %1211 = vmatpush1.msra.mxu0 0.0
    %1212 = vmatprep.subr.mxu0 0.0
    %1213 = vmatpush1.msra.mxu0 0.0
    %1214 = vmatprep.subr.mxu0 0.0
    %1215 = vmatpush1.msra.mxu0 0.0
    %1216 = vmatprep.subr.mxu0 0.0
    %1217 = vmatpush1.msra.mxu0 0.0
    %1218 = vmatprep.subr.mxu0 0.0
    %1219 = vmatpush1.msra.mxu0 0.0
    %1220 = vmatprep.subr.mxu0 0.0
    %1221 = vmatpush1.msra.mxu0 0.0
    %1222 = vmatprep.subr.mxu0 0.0
    %1223 = vmatpush1.msra.mxu0 0.0
    %1224 = vmatprep.subr.mxu0 0.0
    %1225 = vmatpush1.msra.mxu0 0.0
    %1226 = vmatprep.subr.mxu0 0.0
    %1227 = vmatpush1.msra.mxu0 0.0
    %1228 = vmatprep.subr.mxu0 0.0
    %1229 = vmatpush1.msra.mxu0 0.0
    %1230 = vmatprep.subr.mxu0 0.0
    %1231 = vmatpush1.msra.mxu0 0.0
    %1232 = vmatprep.subr.mxu0 0.0
    %1233 = vmatpush1.msra.mxu0 0.0
    %1234 = vmatprep.subr.mxu0 0.0
    %1235 = vmatpush1.msra.mxu0 0.0
    %1236 = vmatprep.subr.mxu0 0.0
    %1237 = vmatpush1.msra.mxu0 0.0
    %1238 = vmatprep.subr.mxu0 0.0
    %1239 = vmatpush1.msra.mxu0 0.0
    %1240 = vmatprep.subr.mxu0 0.0
    %1241 = vmatpush1.msra.mxu0 0.0
    %1242 = vmatprep.subr.mxu0 0.0
    %1243 = vmatpush1.msra.mxu0 0.0
    %1244 = vmatprep.subr.mxu0 0.0
    %1245 = vmatpush1.msra.mxu0 0.0
    %1246 = vmatprep.subr.mxu0 0.0
    %1247 = vmatpush1.msra.mxu0 0.0
    %1248 = vmatprep.subr.mxu0 0.0
    %1249 = vmatpush1.msra.mxu0 0.0
    %1250 = vmatprep.subr.mxu0 0.0
    %1251 = vmatpush1.msra.mxu0 0.0
    %1252 = vmatprep.subr.mxu0 0.0
    %1253 = vmatpush1.msra.mxu0 0.0
    %1254 = vmatprep.subr.mxu0 0.0
    %1255 = vmatpush1.msra.mxu0 0.0
    %1256 = vmatprep.subr.mxu0 0.0
    %1257 = vmatpush1.msra.mxu0 0.0
    %1258 = vmatprep.subr.mxu0 0.0
    %1259 = vmatpush1.msra.mxu0 0.0
    %1260 = vmatprep.subr.mxu0 0.0
    %1261 = vmatpush1.msra.mxu0 0.0
    %1262 = vmatprep.mubr.f32.mxu0 0.0
    %1263 = vmatmul.mubr.f32.gmra.mrb[0].mxu0 %v1196
    %v1264 = vpop.f32.mrb[0].mxu0
    %v1265 = vadd.f32 %v1193, %v1264
    %v1266 = vpop.f32.mrb[0].mxu0
    %1267 = vdwg.mxu0
    %v1268 = vld [vmem:[%s6] sm:$0xff]
    %1270 = vrot.lane.b32.xlu0 %v1265, 96
    %v1271 = vpop.permute.xlu0 %1270
    %v1272 = vsel %vm91, %v1265, 0
    %v1274 = vsel %vm91, %v1271, 0
    %1276 = vmatprep.subr.mxu0 0.0
    %1277 = vmatpush1.xpose.msra.mxu0 %v1274
    %1278 = vmatprep.subr.mxu0 0.0
    %1279 = vmatpush1.xpose.msra.mxu0 0.0
    %1280 = vmatprep.subr.mxu0 0.0
    %1281 = vmatpush1.xpose.msra.mxu0 0.0
    %1282 = vmatprep.subr.mxu0 0.0
    %1283 = vmatpush1.xpose.msra.mxu0 0.0
    %1284 = vmatprep.subr.mxu0 0.0
    %1285 = vmatpush1.xpose.msra.mxu0 0.0
    %1286 = vmatprep.subr.mxu0 0.0
    %1287 = vmatpush1.xpose.msra.mxu0 0.0
    %1288 = vmatprep.subr.mxu0 0.0
    %1289 = vmatpush1.xpose.msra.mxu0 0.0
    %1290 = vmatprep.subr.mxu0 0.0
    %1291 = vmatpush1.xpose.msra.mxu0 0.0
    %1292 = vmatprep.subr.mxu0 0.0
    %1293 = vmatpush1.xpose.msra.mxu0 0.0
    %1294 = vmatprep.subr.mxu0 0.0
    %1295 = vmatpush1.xpose.msra.mxu0 0.0
    %1296 = vmatprep.subr.mxu0 0.0
    %1297 = vmatpush1.xpose.msra.mxu0 0.0
    %1298 = vmatprep.subr.mxu0 0.0
    %1299 = vmatpush1.xpose.msra.mxu0 0.0
    %1300 = vmatprep.subr.mxu0 0.0
    %1301 = vmatpush1.xpose.msra.mxu0 0.0
    %1302 = vmatprep.subr.mxu0 0.0
    %1303 = vmatpush1.xpose.msra.mxu0 0.0
    %1304 = vmatprep.subr.mxu0 0.0
    %1305 = vmatpush1.xpose.msra.mxu0 0.0
    %1306 = vmatprep.subr.mxu0 0.0
    %1307 = vmatpush1.xpose.msra.mxu0 0.0
    %1308 = vmatprep.subr.mxu0 0.0
    %1309 = vmatpush1.xpose.msra.mxu0 0.0
    %1310 = vmatprep.subr.mxu0 0.0
    %1311 = vmatpush1.xpose.msra.mxu0 0.0
    %1312 = vmatprep.subr.mxu0 0.0
    %1313 = vmatpush1.xpose.msra.mxu0 0.0
    %1314 = vmatprep.subr.mxu0 0.0
    %1315 = vmatpush1.xpose.msra.mxu0 0.0
    %1316 = vmatprep.subr.mxu0 0.0
    %1317 = vmatpush1.xpose.msra.mxu0 0.0
    %1318 = vmatprep.subr.mxu0 0.0
    %1319 = vmatpush1.xpose.msra.mxu0 0.0
    %1320 = vmatprep.subr.mxu0 0.0
    %1321 = vmatpush1.xpose.msra.mxu0 0.0
    %1322 = vmatprep.subr.mxu0 0.0
    %1323 = vmatpush1.xpose.msra.mxu0 0.0
    %1324 = vmatprep.subr.mxu0 0.0
    %1325 = vmatpush1.xpose.msra.mxu0 0.0
    %1326 = vmatprep.subr.mxu0 0.0
    %1327 = vmatpush1.xpose.msra.mxu0 0.0
    %1328 = vmatprep.subr.mxu0 0.0
    %1329 = vmatpush1.xpose.msra.mxu0 0.0
    %1330 = vmatprep.subr.mxu0 0.0
    %1331 = vmatpush1.xpose.msra.mxu0 0.0
    %1332 = vmatprep.subr.mxu0 0.0
    %1333 = vmatpush1.xpose.msra.mxu0 0.0
    %1334 = vmatprep.subr.mxu0 0.0
    %1335 = vmatpush1.xpose.msra.mxu0 0.0
    %1336 = vmatprep.subr.mxu0 0.0
    %1337 = vmatpush1.xpose.msra.mxu0 0.0
    %1338 = vmatprep.subr.mxu0 0.0
    %1339 = vmatpush1.xpose.msra.mxu0 0.0
    %1340 = vmatprep.mubr.f32.mxu0 0.0
    %1341 = vmatmul.mubr.f32.gmra.mrb[0].mxu0 %v1272
    %v1342 = vpop.f32.mrb[0].mxu0
    %v1343 = vadd.f32 %v1268, %v1342
    %v1344 = vpop.f32.mrb[0].mxu0
    %1345 = vdwg.mxu0
    %v1346 = vsel %vm1110, %v1343, -inf
    %1347 = vmax.xlane.f32.xlu0 %v1346
    %v1348 = vpop.xlane.xlu0 %1347
    %v1349 = vsub.f32 %v1343, %v1348
    %v1350 = vmul.f32 %v1349, 1.442695
    %v1351 = vpow.pop %v1350
    %v1352 = vsel %vm1110, %v1351, 0.0
    %1353 = vadd.xlane.f32.xlu0 %v1352
    %v1354 = vpop.xlane.xlu0 %1353
    %v1355 = vrcp.pop %v1354
    %v1356 = vmul.f32 %v1351, %v1355
    %1357 = vrot.lane.b32.xlu0 %v1265, 64
    %v1358 = vpop.permute.xlu0 %1357
    %v1361 = vsel %vm1110, %v1356, 0
    %1363 = vmatprep.subr.mxu0 0.0
    %1364 = vmatpush1.msra.mxu0 %v1358
    %1365 = vmatprep.subr.mxu0 0.0
    %1366 = vmatpush1.msra.mxu0 0.0
    %1367 = vmatprep.subr.mxu0 0.0
    %1368 = vmatpush1.msra.mxu0 0.0
    %1369 = vmatprep.subr.mxu0 0.0
    %1370 = vmatpush1.msra.mxu0 0.0
    %1371 = vmatprep.subr.mxu0 0.0
    %1372 = vmatpush1.msra.mxu0 0.0
    %1373 = vmatprep.subr.mxu0 0.0
    %1374 = vmatpush1.msra.mxu0 0.0
    %1375 = vmatprep.subr.mxu0 0.0
    %1376 = vmatpush1.msra.mxu0 0.0
    %1377 = vmatprep.subr.mxu0 0.0
    %1378 = vmatpush1.msra.mxu0 0.0
    %1379 = vmatprep.subr.mxu0 0.0
    %1380 = vmatpush1.msra.mxu0 0.0
    %1381 = vmatprep.subr.mxu0 0.0
    %1382 = vmatpush1.msra.mxu0 0.0
    %1383 = vmatprep.subr.mxu0 0.0
    %1384 = vmatpush1.msra.mxu0 0.0
    %1385 = vmatprep.subr.mxu0 0.0
    %1386 = vmatpush1.msra.mxu0 0.0
    %1387 = vmatprep.subr.mxu0 0.0
    %1388 = vmatpush1.msra.mxu0 0.0
    %1389 = vmatprep.subr.mxu0 0.0
    %1390 = vmatpush1.msra.mxu0 0.0
    %1391 = vmatprep.subr.mxu0 0.0
    %1392 = vmatpush1.msra.mxu0 0.0
    %1393 = vmatprep.subr.mxu0 0.0
    %1394 = vmatpush1.msra.mxu0 0.0
    %1395 = vmatprep.subr.mxu0 0.0
    %1396 = vmatpush1.msra.mxu0 0.0
    %1397 = vmatprep.subr.mxu0 0.0
    %1398 = vmatpush1.msra.mxu0 0.0
    %1399 = vmatprep.subr.mxu0 0.0
    %1400 = vmatpush1.msra.mxu0 0.0
    %1401 = vmatprep.subr.mxu0 0.0
    %1402 = vmatpush1.msra.mxu0 0.0
    %1403 = vmatprep.subr.mxu0 0.0
    %1404 = vmatpush1.msra.mxu0 0.0
    %1405 = vmatprep.subr.mxu0 0.0
    %1406 = vmatpush1.msra.mxu0 0.0
    %1407 = vmatprep.subr.mxu0 0.0
    %1408 = vmatpush1.msra.mxu0 0.0
    %1409 = vmatprep.subr.mxu0 0.0
    %1410 = vmatpush1.msra.mxu0 0.0
    %1411 = vmatprep.subr.mxu0 0.0
    %1412 = vmatpush1.msra.mxu0 0.0
    %1413 = vmatprep.subr.mxu0 0.0
    %1414 = vmatpush1.msra.mxu0 0.0
    %1415 = vmatprep.subr.mxu0 0.0
    %1416 = vmatpush1.msra.mxu0 0.0
    %1417 = vmatprep.subr.mxu0 0.0
    %1418 = vmatpush1.msra.mxu0 0.0
    %1419 = vmatprep.subr.mxu0 0.0
    %1420 = vmatpush1.msra.mxu0 0.0
    %1421 = vmatprep.subr.mxu0 0.0
    %1422 = vmatpush1.msra.mxu0 0.0
    %1423 = vmatprep.subr.mxu0 0.0
    %1424 = vmatpush1.msra.mxu0 0.0
    %1425 = vmatprep.subr.mxu0 0.0
    %1426 = vmatpush1.msra.mxu0 0.0
    %1427 = vmatprep.mubr.f32.mxu0 0.0
    %1428 = vmatmul.mubr.f32.gmra.mrb[0].mxu0 %v1361
    %v1429 = vpop.f32.mrb[0].mxu0
    %v1430 = vadd.f32 0.0, %v1429
    %v1431 = vpop.f32.mrb[0].mxu0
    %1432 = vdwg.mxu0
    %v1433 = vld [vmem:[%s9] sm:$0xff]
    %v1434 = vld [vmem:[%s9 + $0x8] sm:$0xff]
    %v1435 = vld [vmem:[%s9 + $0x10] sm:$0xff]
    %v1436 = vld [vmem:[%s9 + $0x18] sm:$0xff]
    %v1437 = vld [vmem:[%s15] sm:$0x1]
    %v1438 = vlaneseq
    %v1439 = vshrl.u32 %v1438, 7
    %v1440 = vsub.s32 0, %v1439
    %v1441 = vrot.slane %v1437, %v1440
    %v1443 = vsel %vm91, %v1430, 0
    %1445 = vmatprep.subr.mxu0 0.0
    %1446 = vmatpush1.msra.mxu0 %v1433
    %1447 = vmatprep.subr.mxu0 0.0
    %1448 = vmatpush1.msra.mxu0 %v1434
    %1449 = vmatprep.subr.mxu0 0.0
    %1450 = vmatpush1.msra.mxu0 %v1435
    %1451 = vmatprep.subr.mxu0 0.0
    %1452 = vmatpush1.msra.mxu0 %v1436
    %1453 = vmatprep.subr.mxu0 0.0
    %1454 = vmatpush1.msra.mxu0 0.0
    %1455 = vmatprep.subr.mxu0 0.0
    %1456 = vmatpush1.msra.mxu0 0.0
    %1457 = vmatprep.subr.mxu0 0.0
    %1458 = vmatpush1.msra.mxu0 0.0
    %1459 = vmatprep.subr.mxu0 0.0
    %1460 = vmatpush1.msra.mxu0 0.0
    %1461 = vmatprep.subr.mxu0 0.0
    %1462 = vmatpush1.msra.mxu0 0.0
    %1463 = vmatprep.subr.mxu0 0.0
    %1464 = vmatpush1.msra.mxu0 0.0
    %1465 = vmatprep.subr.mxu0 0.0
    %1466 = vmatpush1.msra.mxu0 0.0
    %1467 = vmatprep.subr.mxu0 0.0
    %1468 = vmatpush1.msra.mxu0 0.0
    %1469 = vmatprep.subr.mxu0 0.0
    %1470 = vmatpush1.msra.mxu0 0.0
    %1471 = vmatprep.subr.mxu0 0.0
    %1472 = vmatpush1.msra.mxu0 0.0
    %1473 = vmatprep.subr.mxu0 0.0
    %1474 = vmatpush1.msra.mxu0 0.0
    %1475 = vmatprep.subr.mxu0 0.0
    %1476 = vmatpush1.msra.mxu0 0.0
    %1477 = vmatprep.subr.mxu0 0.0
    %1478 = vmatpush1.msra.mxu0 0.0
    %1479 = vmatprep.subr.mxu0 0.0
    %1480 = vmatpush1.msra.mxu0 0.0
    %1481 = vmatprep.subr.mxu0 0.0
    %1482 = vmatpush1.msra.mxu0 0.0
    %1483 = vmatprep.subr.mxu0 0.0
    %1484 = vmatpush1.msra.mxu0 0.0
    %1485 = vmatprep.subr.mxu0 0.0
    %1486 = vmatpush1.msra.mxu0 0.0
    %1487 = vmatprep.subr.mxu0 0.0
    %1488 = vmatpush1.msra.mxu0 0.0
    %1489 = vmatprep.subr.mxu0 0.0
    %1490 = vmatpush1.msra.mxu0 0.0
    %1491 = vmatprep.subr.mxu0 0.0
    %1492 = vmatpush1.msra.mxu0 0.0
    %1493 = vmatprep.subr.mxu0 0.0
    %1494 = vmatpush1.msra.mxu0 0.0
    %1495 = vmatprep.subr.mxu0 0.0
    %1496 = vmatpush1.msra.mxu0 0.0
    %1497 = vmatprep.subr.mxu0 0.0
    %1498 = vmatpush1.msra.mxu0 0.0
    %1499 = vmatprep.subr.mxu0 0.0
    %1500 = vmatpush1.msra.mxu0 0.0
    %1501 = vmatprep.subr.mxu0 0.0
    %1502 = vmatpush1.msra.mxu0 0.0
    %1503 = vmatprep.subr.mxu0 0.0
    %1504 = vmatpush1.msra.mxu0 0.0
    %1505 = vmatprep.subr.mxu0 0.0
    %1506 = vmatpush1.msra.mxu0 0.0
    %1507 = vmatprep.subr.mxu0 0.0
    %1508 = vmatpush1.msra.mxu0 0.0
    %1509 = vmatprep.mubr.f32.mxu0 0.0
    %1510 = vmatmul.mubr.f32.gmra.mrb[0].mxu0 %v1443
    %v1511 = vpop.f32.mrb[0].mxu0
    %v1512 = vadd.f32 %v1441, %v1511
    %v1513 = vpop.f32.mrb[0].mxu0
    %1514 = vdwg.mxu0
    %v1515 = vadd.f32 %v1181, %v1512
    %v1516 = vld [vmem:[%s15 + $0x2] sm:$0x1]
    %v1517 = vld [vmem:[%s15 + $0x3] sm:$0x1]
    %v1518 = vsel %vm91, %v1515, 0.0
    %1519 = vadd.xlane.f32.xlu0 %v1518
    %v1520 = vpop.xlane.xlu0 %1519
    %v1521 = vrcp.pop 32.0
    %v1522 = vmul.f32 %v1520, %v1521
    %v1523 = vsub.f32 %v1515, %v1522
    %v1524 = vmul.f32 %v1523, %v1523
    %v1525 = vsel %vm91, %v1524, 0.0
    %1526 = vadd.xlane.f32.xlu0 %v1525
    %v1527 = vpop.xlane.xlu0 %1526
    %v1528 = vmul.f32 %v1527, %v1521
    %v1529 = vadd.f32 %v1528, 1e-05
    %v1530 = vrsqrt.pop %v1529
    %v1531 = vmul.f32 %v1523, %v1530
    %v1532 = vlaneseq
    %v1533 = vshrl.u32 %v1532, 7
    %v1534 = vsub.s32 0, %v1533
    %v1535 = vrot.slane %v1516, %v1534
    %v1536 = vmul.f32 %v1531, %v1535
    %v1537 = vlaneseq
    %v1538 = vshrl.u32 %v1537, 7
    %v1539 = vsub.s32 0, %v1538
    %v1540 = vrot.slane %v1517, %v1539
    %v1541 = vadd.f32 %v1536, %v1540
    %v1542 = vld [vmem:[%s10] sm:$0xff]
    %v1543 = vld [vmem:[%s10 + $0x8] sm:$0xff]
    %v1544 = vld [vmem:[%s10 + $0x10] sm:$0xff]
    %v1545 = vld [vmem:[%s10 + $0x18] sm:$0xff]
    %v1546 = vld [vmem:[%s11] sm:$0x1]
    %v1548 = vlaneseq
    %v1549 = vshrl.u32 %v1548, 7
    %v1550 = vsub.s32 0, %v1549
    %v1551 = vrot.slane %v1546, %v1550
    %v1554 = vsel %vm91, %v1541, 0
    %1556 = vmatprep.subr.mxu0 0.0
    %1557 = vmatpush1.msra.mxu0 %v1542
    %1558 = vmatprep.subr.mxu0 0.0
    %1559 = vmatpush1.msra.mxu0 %v1543
    %1560 = vmatprep.subr.mxu0 0.0
    %1561 = vmatpush1.msra.mxu0 %v1544
    %1562 = vmatprep.subr.mxu0 0.0
    %1563 = vmatpush1.msra.mxu0 %v1545
    %1564 = vmatprep.subr.mxu0 0.0
    %1565 = vmatpush1.msra.mxu0 0.0
    %1566 = vmatprep.subr.mxu0 0.0
    %1567 = vmatpush1.msra.mxu0 0.0
    %1568 = vmatprep.subr.mxu0 0.0
    %1569 = vmatpush1.msra.mxu0 0.0
    %1570 = vmatprep.subr.mxu0 0.0
    %1571 = vmatpush1.msra.mxu0 0.0
    %1572 = vmatprep.subr.mxu0 0.0
    %1573 = vmatpush1.msra.mxu0 0.0
    %1574 = vmatprep.subr.mxu0 0.0
    %1575 = vmatpush1.msra.mxu0 0.0
    %1576 = vmatprep.subr.mxu0 0.0
    %1577 = vmatpush1.msra.mxu0 0.0
    %1578 = vmatprep.subr.mxu0 0.0
    %1579 = vmatpush1.msra.mxu0 0.0
    %1580 = vmatprep.subr.mxu0 0.0
    %1581 = vmatpush1.msra.mxu0 0.0
    %1582 = vmatprep.subr.mxu0 0.0
    %1583 = vmatpush1.msra.mxu0 0.0
    %1584 = vmatprep.subr.mxu0 0.0
    %1585 = vmatpush1.msra.mxu0 0.0
    %1586 = vmatprep.subr.mxu0 0.0
    %1587 = vmatpush1.msra.mxu0 0.0
    %1588 = vmatprep.subr.mxu0 0.0
    %1589 = vmatpush1.msra.mxu0 0.0
    %1590 = vmatprep.subr.mxu0 0.0
    %1591 = vmatpush1.msra.mxu0 0.0
    %1592 = vmatprep.subr.mxu0 0.0
    %1593 = vmatpush1.msra.mxu0 0.0
    %1594 = vmatprep.subr.mxu0 0.0
    %1595 = vmatpush1.msra.mxu0 0.0
    %1596 = vmatprep.subr.mxu0 0.0
    %1597 = vmatpush1.msra.mxu0 0.0
    %1598 = vmatprep.subr.mxu0 0.0
    %1599 = vmatpush1.msra.mxu0 0.0
    %1600 = vmatprep.subr.mxu0 0.0
    %1601 = vmatpush1.msra.mxu0 0.0
    %1602 = vmatprep.subr.mxu0 0.0
    %1603 = vmatpush1.msra.mxu0 0.0
    %1604 = vmatprep.subr.mxu0 0.0
    %1605 = vmatpush1.msra.mxu0 0.0
    %1606 = vmatprep.subr.mxu0 0.0
    %1607 = vmatpush1.msra.mxu0 0.0
    %1608 = vmatprep.subr.mxu0 0.0
    %1609 = vmatpush1.msra.mxu0 0.0
    %1610 = vmatprep.subr.mxu0 0.0
    %1611 = vmatpush1.msra.mxu0 0.0
    %1612 = vmatprep.subr.mxu0 0.0
    %1613 = vmatpush1.msra.mxu0 0.0
    %1614 = vmatprep.subr.mxu0 0.0
    %1615 = vmatpush1.msra.mxu0 0.0
    %1616 = vmatprep.subr.mxu0 0.0
    %1617 = vmatpush1.msra.mxu0 0.0
    %1618 = vmatprep.subr.mxu0 0.0
    %1619 = vmatpush1.msra.mxu0 0.0
    %1620 = vmatprep.mubr.f32.mxu0 0.0
    %1621 = vmatmul.mubr.f32.gmra.mrb[0].mxu0 %v1554
    %v1622 = vpop.f32.mrb[0].mxu0
    %v1623 = vadd.f32 %v1551, %v1622
    %v1624 = vpop.f32.mrb[0].mxu0
    %1625 = vdwg.mxu0
    %v1626 = vmax.f32 %v1623, 0.0
    %v1627 = vld [vmem:[%s12] sm:$0xff]
    %v1628 = vld [vmem:[%s12 + $0x8] sm:$0xff]
    %v1629 = vld [vmem:[%s12 + $0x10] sm:$0xff]
    %v1630 = vld [vmem:[%s12 + $0x18] sm:$0xff]
    %v1631 = vld [vmem:[%s12 + $0x20] sm:$0xff]
    %v1632 = vld [vmem:[%s12 + $0x28] sm:$0xff]
    %v1633 = vld [vmem:[%s12 + $0x30] sm:$0xff]
    %v1634 = vld [vmem:[%s12 + $0x38] sm:$0xff]
    %v1635 = vld [vmem:[%s15 + $0x1] sm:$0x1]
    %v1636 = vlaneseq
    %v1637 = vshrl.u32 %v1636, 7
    %v1638 = vsub.s32 0, %v1637
    %v1639 = vrot.slane %v1635, %v1638
    %vm1640 = vcmask 523264
    %v1642 = vsel %vm1640, %v1626, 0
    %1644 = vmatprep.subr.mxu0 0.0
    %1645 = vmatpush1.msra.mxu0 %v1627
    %1646 = vmatprep.subr.mxu0 0.0
    %1647 = vmatpush1.msra.mxu0 %v1628
    %1648 = vmatprep.subr.mxu0 0.0
    %1649 = vmatpush1.msra.mxu0 %v1629
    %1650 = vmatprep.subr.mxu0 0.0
    %1651 = vmatpush1.msra.mxu0 %v1630
    %1652 = vmatprep.subr.mxu0 0.0
    %1653 = vmatpush1.msra.mxu0 %v1631
    %1654 = vmatprep.subr.mxu0 0.0
    %1655 = vmatpush1.msra.mxu0 %v1632
    %1656 = vmatprep.subr.mxu0 0.0
    %1657 = vmatpush1.msra.mxu0 %v1633
    %1658 = vmatprep.subr.mxu0 0.0
    %1659 = vmatpush1.msra.mxu0 %v1634
    %1660 = vmatprep.subr.mxu0 0.0
    %1661 = vmatpush1.msra.mxu0 0.0
    %1662 = vmatprep.subr.mxu0 0.0
    %1663 = vmatpush1.msra.mxu0 0.0
    %1664 = vmatprep.subr.mxu0 0.0
    %1665 = vmatpush1.msra.mxu0 0.0
    %1666 = vmatprep.subr.mxu0 0.0
    %1667 = vmatpush1.msra.mxu0 0.0
    %1668 = vmatprep.subr.mxu0 0.0
    %1669 = vmatpush1.msra.mxu0 0.0
    %1670 = vmatprep.subr.mxu0 0.0
    %1671 = vmatpush1.msra.mxu0 0.0
    %1672 = vmatprep.subr.mxu0 0.0
    %1673 = vmatpush1.msra.mxu0 0.0
    %1674 = vmatprep.subr.mxu0 0.0
    %1675 = vmatpush1.msra.mxu0 0.0
    %1676 = vmatprep.subr.mxu0 0.0
    %1677 = vmatpush1.msra.mxu0 0.0
    %1678 = vmatprep.subr.mxu0 0.0
    %1679 = vmatpush1.msra.mxu0 0.0
    %1680 = vmatprep.subr.mxu0 0.0
    %1681 = vmatpush1.msra.mxu0 0.0
    %1682 = vmatprep.subr.mxu0 0.0
    %1683 = vmatpush1.msra.mxu0 0.0
    %1684 = vmatprep.subr.mxu0 0.0
    %1685 = vmatpush1.msra.mxu0 0.0
    %1686 = vmatprep.subr.mxu0 0.0
    %1687 = vmatpush1.msra.mxu0 0.0
    %1688 = vmatprep.subr.mxu0 0.0
    %1689 = vmatpush1.msra.mxu0 0.0
    %1690 = vmatprep.subr.mxu0 0.0
    %1691 = vmatpush1.msra.mxu0 0.0
    %1692 = vmatprep.subr.mxu0 0.0
    %1693 = vmatpush1.msra.mxu0 0.0
    %1694 = vmatprep.subr.mxu0 0.0
    %1695 = vmatpush1.msra.mxu0 0.0
    %1696 = vmatprep.subr.mxu0 0.0
    %1697 = vmatpush1.msra.mxu0 0.0
    %1698 = vmatprep.subr.mxu0 0.0
    %1699 = vmatpush1.msra.mxu0 0.0
    %1700 = vmatprep.subr.mxu0 0.0
    %1701 = vmatpush1.msra.mxu0 0.0
    %1702 = vmatprep.subr.mxu0 0.0
    %1703 = vmatpush1.msra.mxu0 0.0
    %1704 = vmatprep.subr.mxu0 0.0
    %1705 = vmatpush1.msra.mxu0 0.0
    %1706 = vmatprep.subr.mxu0 0.0
    %1707 = vmatpush1.msra.mxu0 0.0
    %1708 = vmatprep.mubr.f32.mxu0 0.0
    %1709 = vmatmul.mubr.f32.gmra.mrb[0].mxu0 %v1642
    %v1710 = vpop.f32.mrb[0].mxu0
    %v1711 = vadd.f32 %v1639, %v1710
    %v1712 = vpop.f32.mrb[0].mxu0
    %1713 = vdwg.mxu0
    %v1714 = vadd.f32 %v1541, %v1711
    %v1715 = vld [vmem:[%s15 + $0x4] sm:$0x1]
    %v1716 = vld [vmem:[%s15 + $0x5] sm:$0x1]
    %v1717 = vsel %vm91, %v1714, 0.0
    %1718 = vadd.xlane.f32.xlu0 %v1717
    %v1719 = vpop.xlane.xlu0 %1718
    %v1720 = vmul.f32 %v1719, %v1521
    %v1721 = vsub.f32 %v1714, %v1720
    %v1722 = vmul.f32 %v1721, %v1721
    %v1723 = vsel %vm91, %v1722, 0.0
    %1724 = vadd.xlane.f32.xlu0 %v1723
    %v1725 = vpop.xlane.xlu0 %1724
    %v1726 = vmul.f32 %v1725, %v1521
    %v1727 = vadd.f32 %v1726, 1e-05
    %v1728 = vrsqrt.pop %v1727
    %v1729 = vmul.f32 %v1721, %v1728
    %v1730 = vlaneseq
    %v1731 = vshrl.u32 %v1730, 7
    %v1732 = vsub.s32 0, %v1731
    %v1733 = vrot.slane %v1715, %v1732
    %v1734 = vmul.f32 %v1729, %v1733
    %v1735 = vlaneseq
    %v1736 = vshrl.u32 %v1735, 7
    %v1737 = vsub.s32 0, %v1736
    %v1738 = vrot.slane %v1716, %v1737
    %v1739 = vadd.f32 %v1734, %v1738
    %v1740 = vld [vmem:[#allocation3] sm:$0xff]
    %v1741 = vld [vmem:[#allocation3 + $0x8] sm:$0xff]
    %v1742 = vld [vmem:[#allocation3 + $0x10] sm:$0xff]
    %v1743 = vld [vmem:[#allocation3 + $0x18] sm:$0xff]
    %v1744 = vld [vmem:[%s14] sm:$0x1]
    %v1746 = vlaneseq
    %v1747 = vshrl.u32 %v1746, 7
    %v1748 = vsub.s32 0, %v1747
    %v1749 = vrot.slane %v1744, %v1748
    %v1752 = vsel %vm91, %v1739, 0
    %1754 = vmatprep.subr.mxu0 0.0
    %1755 = vmatpush1.msra.mxu0 %v1740
    %1756 = vmatprep.subr.mxu0 0.0
    %1757 = vmatpush1.msra.mxu0 %v1741
    %1758 = vmatprep.subr.mxu0 0.0
    %1759 = vmatpush1.msra.mxu0 %v1742
    %1760 = vmatprep.subr.mxu0 0.0
    %1761 = vmatpush1.msra.mxu0 %v1743
    %1762 = vmatprep.subr.mxu0 0.0
    %1763 = vmatpush1.msra.mxu0 0.0
    %1764 = vmatprep.subr.mxu0 0.0
    %1765 = vmatpush1.msra.mxu0 0.0
    %1766 = vmatprep.subr.mxu0 0.0
    %1767 = vmatpush1.msra.mxu0 0.0
    %1768 = vmatprep.subr.mxu0 0.0
    %1769 = vmatpush1.msra.mxu0 0.0
    %1770 = vmatprep.subr.mxu0 0.0
    %1771 = vmatpush1.msra.mxu0 0.0
    %1772 = vmatprep.subr.mxu0 0.0
    %1773 = vmatpush1.msra.mxu0 0.0
    %1774 = vmatprep.subr.mxu0 0.0
    %1775 = vmatpush1.msra.mxu0 0.0
    %1776 = vmatprep.subr.mxu0 0.0
    %1777 = vmatpush1.msra.mxu0 0.0
    %1778 = vmatprep.subr.mxu0 0.0
    %1779 = vmatpush1.msra.mxu0 0.0
    %1780 = vmatprep.subr.mxu0 0.0
    %1781 = vmatpush1.msra.mxu0 0.0
    %1782 = vmatprep.subr.mxu0 0.0
    %1783 = vmatpush1.msra.mxu0 0.0
    %1784 = vmatprep.subr.mxu0 0.0
    %1785 = vmatpush1.msra.mxu0 0.0
    %1786 = vmatprep.subr.mxu0 0.0
    %1787 = vmatpush1.msra.mxu0 0.0
    %1788 = vmatprep.subr.mxu0 0.0
    %1789 = vmatpush1.msra.mxu0 0.0
    %1790 = vmatprep.subr.mxu0 0.0
    %1791 = vmatpush1.msra.mxu0 0.0
    %1792 = vmatprep.subr.mxu0 0.0
    %1793 = vmatpush1.msra.mxu0 0.0
    %1794 = vmatprep.subr.mxu0 0.0
    %1795 = vmatpush1.msra.mxu0 0.0
    %1796 = vmatprep.subr.mxu0 0.0
    %1797 = vmatpush1.msra.mxu0 0.0
    %1798 = vmatprep.subr.mxu0 0.0
    %1799 = vmatpush1.msra.mxu0 0.0
    %1800 = vmatprep.subr.mxu0 0.0
    %1801 = vmatpush1.msra.mxu0 0.0
    %1802 = vmatprep.subr.mxu0 0.0
    %1803 = vmatpush1.msra.mxu0 0.0
    %1804 = vmatprep.subr.mxu0 0.0
    %1805 = vmatpush1.msra.mxu0 0.0
    %1806 = vmatprep.subr.mxu0 0.0
    %1807 = vmatpush1.msra.mxu0 0.0
    %1808 = vmatprep.subr.mxu0 0.0
    %1809 = vmatpush1.msra.mxu0 0.0
    %1810 = vmatprep.subr.mxu0 0.0
    %1811 = vmatpush1.msra.mxu0 0.0
    %1812 = vmatprep.subr.mxu0 0.0
    %1813 = vmatpush1.msra.mxu0 0.0
    %1814 = vmatprep.subr.mxu0 0.0
    %1815 = vmatpush1.msra.mxu0 0.0
    %1816 = vmatprep.subr.mxu0 0.0
    %1817 = vmatpush1.msra.mxu0 0.0
    %1818 = vmatprep.mubr.f32.mxu0 0.0
    %1819 = vmatmul.mubr.f32.gmra.mrb[0].mxu0 %v1752
    %v1820 = vpop.f32.mrb[0].mxu0
    %v1821 = vadd.f32 %v1749, %v1820
    %v1822 = vpop.f32.mrb[0].mxu0
    %1823 = vdwg.mxu0
    %1824 = vst [vmem:[%s16] sm:$0xff] %v1821
    // Predicated region
    $region70: #{forward.1} parent=1 // pred_check
      _
    $region71: #{forward.1} parent=1 // pred_check_branch
      %1826 = sbr.rel (0) target = $region73
    $region72: #{forward.1} parent=1 // pred_region
      _
    $region73: #{forward.1} parent=1 // pred_fallthru
      _
    // Predicated region
    $region74: #{forward.1} parent=1 // pred_check
      _
    $region75: #{forward.1} parent=1 // pred_check_branch
      %1828 = sbr.rel (0) target = $region77
    $region76: #{forward.1} parent=1 // pred_region
      _
    $region77: #{forward.1} parent=1 // pred_fallthru
      _
    %1829 = vsyncpa [#allocation4], 1

</llo_original>
